<compile_context>
chip_gen: v7x
topology: tpu7x:2x2x1
jax: 0.10.0
libtpu: 0.0.40
codegen_flags: <defaults>
</compile_context>

<pallas_src>
import functools

import jax
import jax.numpy as jnp
from jax import lax
from jax.experimental import pallas as pl
from jax.experimental.pallas import tpu as pltpu


def convlstm_cell_kernel(patch_ref, w_ref, b_ref, wcif_ref, wco_ref,
                         c_prev_ref, hc_out_ref, *, Co):
    """One batch element per grid step.

    patch_ref : (1, HW, KP)   bf16  im2col patches of cat([X, prev_h])
    w_ref     : (KP, 4*Co)    bf16  conv weight, rows in (kh, kw, cin) order
    b_ref     : (1, 4*Co)     f32   conv bias
    wcif_ref  : (HW, 2*Co)    f32   peephole [W_ci | W_cf]
    wco_ref   : (HW, Co)      f32   peephole W_co
    c_prev_ref: (1, HW, Co)   f32   previous cell state
    hc_out_ref: (1, HW, 2*Co) f32   output [new_h | new_c]
    """
    # Entire conv for this batch element: a single MXU matmul, f32 accumulate.
    conv = jnp.dot(patch_ref[0], w_ref[...],
                   preferred_element_type=jnp.float32)          # (HW, 4*Co)
    conv = conv + b_ref[...]                                    # bias broadcast

    c_prev = c_prev_ref[0]                                      # (HW, Co)

    # torch.chunk order along channels: i, f, c, o.  Fuse i/f on 2*Co lanes.
    if_conv = conv[:, :2 * Co]
    c_conv = conv[:, 2 * Co:3 * Co]
    o_conv = conv[:, 3 * Co:]

    c_prev2 = jnp.concatenate([c_prev, c_prev], axis=-1)        # (HW, 2*Co)
    gates_if = jax.nn.sigmoid(if_conv + wcif_ref[...] * c_prev2)
    input_gate = gates_if[:, :Co]
    forget_gate = gates_if[:, Co:]

    # activation == 'tanh' (module config used here).
    # TODO(synk): only the 'tanh' activation variant is implemented; the
    # module's relu/leakyRelu/sigmoid options would need a kernel switch.
    c_new = forget_gate * c_prev + input_gate * jnp.tanh(c_conv)
    output_gate = jax.nn.sigmoid(o_conv + wco_ref[...] * c_new)
    h_new = output_gate * jnp.tanh(c_new)

    # Single lane-dense (HW, 2*Co) store instead of two narrow ones.
    hc_out_ref[0] = jnp.concatenate([h_new, c_new], axis=-1).astype(
        hc_out_ref.dtype)


def conv_lstm_cell(x, prev_h, prev_c, conv_w, conv_b, w_ci, w_cf, w_co):
    """Pallas wrapper. All arguments in PyTorch conventions:

    x      : (B, C_in, H, W)   NCHW
    prev_h : (B, C_out, H, W)
    prev_c : (B, C_out, H, W)
    conv_w : (4*C_out, C_in + C_out, KH, KW)   OIHW
    conv_b : (4*C_out,)
    w_ci, w_cf, w_co : (C_out, H, W)
    Returns (new_h, new_c) in NCHW.
    """
    B, Cin, H, W = x.shape
    Co = prev_h.shape[1]
    Ct = Cin + Co
    KH, KW = conv_w.shape[2], conv_w.shape[3]
    # 'same' padding for odd kernel sizes (matches the documented config).
    # TODO(synk): even kernel sizes with padding='same' are not handled.
    ph, pw = KH // 2, KW // 2
    HW = H * W
    KP = KH * KW * Ct

    # NCHW -> NHWC
    x_nhwc = jnp.transpose(x, (0, 2, 3, 1))
    h_nhwc = jnp.transpose(prev_h, (0, 2, 3, 1))
    c_flat = jnp.transpose(prev_c, (0, 2, 3, 1)).reshape(B, HW, Co)
    c_flat = c_flat.astype(jnp.float32)

    xh = jnp.concatenate([x_nhwc, h_nhwc], axis=-1)             # (B,H,W,Ct)
    xh_pad = jnp.pad(xh, ((0, 0), (ph, ph), (pw, pw), (0, 0)))

    # im2col: feature order (kh, kw, cin) — must match the weight flattening.
    patches = jnp.concatenate(
        [xh_pad[:, kh:kh + H, kw:kw + W, :]
         for kh in range(KH) for kw in range(KW)],
        axis=-1)                                                # (B,H,W,KP)
    patches = patches.reshape(B, HW, KP).astype(jnp.bfloat16)

    # OIHW -> HWIO -> (KH*KW*Ct, 4*Co), row order (kh, kw, cin).
    w_flat = jnp.transpose(conv_w, (2, 3, 1, 0)).reshape(KP, 4 * Co)
    w_flat = w_flat.astype(jnp.bfloat16)
    b2d = conv_b.reshape(1, 4 * Co).astype(jnp.float32)

    # Peephole (Co, H, W) -> (H*W, Co); W_ci|W_cf concatenated for fused i/f.
    wci = jnp.transpose(w_ci, (1, 2, 0)).reshape(HW, Co)
    wcf = jnp.transpose(w_cf, (1, 2, 0)).reshape(HW, Co)
    wcif = jnp.concatenate([wci, wcf], axis=-1).astype(jnp.float32)
    wco2 = jnp.transpose(w_co, (1, 2, 0)).reshape(HW, Co).astype(jnp.float32)

    kernel = functools.partial(convlstm_cell_kernel, Co=Co)

    hc = pl.pallas_call(
        kernel,
        out_shape=jax.ShapeDtypeStruct((B, HW, 2 * Co), jnp.float32),
        grid_spec=pltpu.PrefetchScalarGridSpec(
            num_scalar_prefetch=0,
            grid=(B,),
            in_specs=[
                pl.BlockSpec((1, HW, KP), lambda b: (b, 0, 0)),    # patches
                pl.BlockSpec((KP, 4 * Co), lambda b: (0, 0)),      # conv W
                pl.BlockSpec((1, 4 * Co), lambda b: (0, 0)),       # bias
                pl.BlockSpec((HW, 2 * Co), lambda b: (0, 0)),      # [Wci|Wcf]
                pl.BlockSpec((HW, Co), lambda b: (0, 0)),          # Wco
                pl.BlockSpec((1, HW, Co), lambda b: (b, 0, 0)),    # prev_c
            ],
            out_specs=pl.BlockSpec((1, HW, 2 * Co), lambda b: (b, 0, 0)),
        ),
        compiler_params=pltpu.CompilerParams(
            dimension_semantics=("parallel",),
            vmem_limit_bytes=32 * 1024 * 1024),
    )(patches, w_flat, b2d, wcif, wco2, c_flat)

    # Split [h | c], back to NCHW.
    h_new = hc[..., :Co].reshape(B, H, W, Co)
    c_new = hc[..., Co:].reshape(B, H, W, Co)
    return (jnp.transpose(h_new, (0, 3, 1, 2)),
            jnp.transpose(c_new, (0, 3, 1, 2)))


def conv_lstm_cell_ref(x, prev_h, prev_c, conv_w, conv_b, w_ci, w_cf, w_co):
    """Pure-JAX f32 reference mirroring the PyTorch forward exactly (NCHW)."""
    xh = jnp.concatenate([x, prev_h], axis=1)
    conv = lax.conv_general_dilated(
        xh, conv_w, window_strides=(1, 1), padding='SAME',
        dimension_numbers=('NCHW', 'OIHW', 'NCHW'))
    conv = conv + conv_b[None, :, None, None]
    Co = prev_h.shape[1]
    i_conv = conv[:, 0 * Co:1 * Co]
    f_conv = conv[:, 1 * Co:2 * Co]
    c_conv = conv[:, 2 * Co:3 * Co]
    o_conv = conv[:, 3 * Co:4 * Co]
    input_gate = jax.nn.sigmoid(i_conv + w_ci * prev_c)
    forget_gate = jax.nn.sigmoid(f_conv + w_cf * prev_c)
    c_new = forget_gate * prev_c + input_gate * jnp.tanh(c_conv)
    output_gate = jax.nn.sigmoid(o_conv + w_co * c_new)
    h_new = output_gate * jnp.tanh(c_new)
    return h_new, c_new


if __name__ == "__main__":
    # Module config: in_channels=4, out_channels=32, kernel_size=3,
    # padding='same', activation='tanh', frame_size=(16, 16).
    B, Cin, H, W = 2, 4, 16, 16
    Co, K = 32, 3
    Ct = Cin + Co

    key = jax.random.PRNGKey(0)
    kx, kh, kc, kw, kb, k1, k2, k3 = jax.random.split(key, 8)

    x = jax.random.normal(kx, (B, Cin, H, W), jnp.float32)
    prev_h = jax.random.normal(kh, (B, Co, H, W), jnp.float32)
    prev_c = jax.random.normal(kc, (B, Co, H, W), jnp.float32)

    # nn.Conv2d-shaped parameters; peephole weights are zeros by default in
    # the module (WeightsInitializer.Zeros) but use small random values so
    # they are actually exercised.
    conv_w = jax.random.normal(kw, (4 * Co, Ct, K, K), jnp.float32) * 0.05
    conv_b = jax.random.normal(kb, (4 * Co,), jnp.float32) * 0.05
    w_ci = jax.random.normal(k1, (Co, H, W), jnp.float32) * 0.05
    w_cf = jax.random.normal(k2, (Co, H, W), jnp.float32) * 0.05
    w_co = jax.random.normal(k3, (Co, H, W), jnp.float32) * 0.05

    new_h, new_c = jax.jit(conv_lstm_cell)(
        x, prev_h, prev_c, conv_w, conv_b, w_ci, w_cf, w_co)
    jax.block_until_ready((new_h, new_c))

    ref_h, ref_c = conv_lstm_cell_ref(
        x, prev_h, prev_c, conv_w, conv_b, w_ci, w_cf, w_co)

    assert new_h.shape == (B, Co, H, W) and new_c.shape == (B, Co, H, W)
    # bf16 matmul operands (f32 accumulation) vs an all-f32 reference:
    # relaxed tolerance accordingly.
    assert jnp.allclose(new_h, ref_h, atol=5e-2, rtol=5e-2)
    assert jnp.allclose(new_c, ref_c, atol=5e-2, rtol=5e-2)

    print("KERNEL_OK")
</pallas_src>

<mosaic_0001>
module attributes {stable_mosaic.version = 11 : i64} {
  func.func @convlstm_cell_kernel(%arg0: i32, %arg1: memref<1x256x324xbf16, #tpu.memory_space<vmem>>, %arg2: memref<324x128xbf16, #tpu.memory_space<vmem>>, %arg3: memref<1x128xf32, #tpu.memory_space<vmem>>, %arg4: memref<256x64xf32, #tpu.memory_space<vmem>>, %arg5: memref<256x32xf32, #tpu.memory_space<vmem>>, %arg6: memref<1x256x32xf32, #tpu.memory_space<vmem>>, %arg7: memref<1x256x64xf32, #tpu.memory_space<vmem>>) attributes {dimension_semantics = [#tpu.dimension_semantics<parallel>], iteration_bounds = array<i64: 2>, scalar_prefetch = 0 : i64, scratch_operands = 0 : i64, tpu.core_type = #tpu.core_type<tc>, window_params = [{transform_indices = @transform_0, window_bounds = array<i64: 1, 256, 324>}, {pipeline_mode = #tpu.pipeline_mode<synchronous>, transform_indices = @transform_1, window_bounds = array<i64: 324, 128>}, {pipeline_mode = #tpu.pipeline_mode<synchronous>, transform_indices = @transform_2, window_bounds = array<i64: 1, 128>}, {pipeline_mode = #tpu.pipeline_mode<synchronous>, transform_indices = @transform_3, window_bounds = array<i64: 256, 64>}, {pipeline_mode = #tpu.pipeline_mode<synchronous>, transform_indices = @transform_4, window_bounds = array<i64: 256, 32>}, {transform_indices = @transform_5, window_bounds = array<i64: 1, 256, 32>}, {transform_indices = @transform_6, window_bounds = array<i64: 1, 256, 64>}]} {
    %c0 = arith.constant 0 : index
    %c0_0 = arith.constant 0 : index
    %c0_1 = arith.constant 0 : index
    %0 = vector.load %arg1[%c0, %c0_0, %c0_1] : memref<1x256x324xbf16, #tpu.memory_space<vmem>>, vector<1x256x324xbf16>
    %1 = vector.shape_cast %0 : vector<1x256x324xbf16> to vector<256x324xbf16>
    %c0_2 = arith.constant 0 : index
    %c0_3 = arith.constant 0 : index
    %2 = vector.load %arg2[%c0_2, %c0_3] : memref<324x128xbf16, #tpu.memory_space<vmem>>, vector<324x128xbf16>
    %cst = arith.constant dense<0.000000e+00> : vector<256x128xf32>
    %3 = tpu.matmul %1, %2, %cst {dimension_numbers = #tpu.dot_dimension_numbers<[1], [0], [0], [1], [0, 0, 1, 1], [], []>} : vector<256x324xbf16>, vector<324x128xbf16>, vector<256x128xf32> -> vector<256x128xf32>
    %c0_4 = arith.constant 0 : index
    %c0_5 = arith.constant 0 : index
    %4 = vector.load %arg3[%c0_4, %c0_5] : memref<1x128xf32, #tpu.memory_space<vmem>>, vector<1x128xf32>
    %5 = vector.broadcast %4 : vector<1x128xf32> to vector<256x128xf32>
    %6 = arith.addf %3, %5 : vector<256x128xf32>
    %c0_6 = arith.constant 0 : index
    %c0_7 = arith.constant 0 : index
    %c0_8 = arith.constant 0 : index
    %7 = vector.load %arg6[%c0_6, %c0_7, %c0_8] : memref<1x256x32xf32, #tpu.memory_space<vmem>>, vector<1x256x32xf32>
    %8 = vector.shape_cast %7 : vector<1x256x32xf32> to vector<256x32xf32>
    %9 = vector.extract_strided_slice %6 {offsets = [0, 0], sizes = [256, 64], strides = [1, 1]} : vector<256x128xf32> to vector<256x64xf32>
    %10 = vector.extract_strided_slice %6 {offsets = [0, 64], sizes = [256, 32], strides = [1, 1]} : vector<256x128xf32> to vector<256x32xf32>
    %11 = vector.extract_strided_slice %6 {offsets = [0, 96], sizes = [256, 32], strides = [1, 1]} : vector<256x128xf32> to vector<256x32xf32>
    %12 = tpu.concatenate %8, %8 in 1 : vector<256x32xf32>, vector<256x32xf32> -> vector<256x64xf32>
    %c0_9 = arith.constant 0 : index
    %c0_10 = arith.constant 0 : index
    %13 = vector.load %arg4[%c0_9, %c0_10] : memref<256x64xf32, #tpu.memory_space<vmem>>, vector<256x64xf32>
    %14 = arith.mulf %13, %12 : vector<256x64xf32>
    %15 = arith.addf %9, %14 : vector<256x64xf32>
    %16 = arith.negf %15 : vector<256x64xf32>
    %17 = math.exp %16 : vector<256x64xf32>
    %cst_11 = arith.constant 1.000000e+00 : f32
    %18 = vector.broadcast %cst_11 : f32 to vector<256x64xf32>
    %19 = arith.addf %18, %17 : vector<256x64xf32>
    %20 = arith.divf %18, %19 : vector<256x64xf32>
    %21 = vector.extract_strided_slice %20 {offsets = [0, 0], sizes = [256, 32], strides = [1, 1]} : vector<256x64xf32> to vector<256x32xf32>
    %22 = vector.extract_strided_slice %20 {offsets = [0, 32], sizes = [256, 32], strides = [1, 1]} : vector<256x64xf32> to vector<256x32xf32>
    %23 = arith.mulf %22, %8 : vector<256x32xf32>
    %24 = math.tanh %10 : vector<256x32xf32>
    %25 = arith.mulf %21, %24 : vector<256x32xf32>
    %26 = arith.addf %23, %25 : vector<256x32xf32>
    %c0_12 = arith.constant 0 : index
    %c0_13 = arith.constant 0 : index
    %27 = vector.load %arg5[%c0_12, %c0_13] : memref<256x32xf32, #tpu.memory_space<vmem>>, vector<256x32xf32>
    %28 = arith.mulf %27, %26 : vector<256x32xf32>
    %29 = arith.addf %11, %28 : vector<256x32xf32>
    %30 = arith.negf %29 : vector<256x32xf32>
    %31 = math.exp %30 : vector<256x32xf32>
    %cst_14 = arith.constant 1.000000e+00 : f32
    %32 = vector.broadcast %cst_14 : f32 to vector<256x32xf32>
    %33 = arith.addf %32, %31 : vector<256x32xf32>
    %34 = arith.divf %32, %33 : vector<256x32xf32>
    %35 = math.tanh %26 : vector<256x32xf32>
    %36 = arith.mulf %34, %35 : vector<256x32xf32>
    %37 = tpu.concatenate %36, %26 in 1 : vector<256x32xf32>, vector<256x32xf32> -> vector<256x64xf32>
    %c0_15 = arith.constant 0 : index
    %c0_16 = arith.constant 0 : index
    %c0_17 = arith.constant 0 : index
    %38 = vector.load %arg7[%c0_15, %c0_16, %c0_17] : memref<1x256x64xf32, #tpu.memory_space<vmem>>, vector<1x256x64xf32>
    %39 = vector.shape_cast %38 : vector<1x256x64xf32> to vector<256x64xf32>
    %40 = vector.shape_cast %37 : vector<256x64xf32> to vector<1x256x64xf32>
    tpu.vector_store %arg7[%c0_15, %c0_16, %c0_17], %40 {strides = array<i32>} : memref<1x256x64xf32, #tpu.memory_space<vmem>>, vector<1x256x64xf32>,
    return
  }
  func.func @transform_0(%arg0: i32) -> (i32, i32, i32) {
    %c0_i32 = arith.constant 0 : i32
    %c0_i32_0 = arith.constant 0 : i32
    %c0_i32_1 = arith.constant 0 : i32
    return %arg0, %c0_i32, %c0_i32_0 : i32, i32, i32
  }
  func.func @transform_1(%arg0: i32) -> (i32, i32) {
    %c0_i32 = arith.constant 0 : i32
    %c0_i32_0 = arith.constant 0 : i32
    %c0_i32_1 = arith.constant 0 : i32
    return %c0_i32, %c0_i32_0 : i32, i32
  }
  func.func @transform_2(%arg0: i32) -> (i32, i32) {
    %c0_i32 = arith.constant 0 : i32
    %c0_i32_0 = arith.constant 0 : i32
    %c0_i32_1 = arith.constant 0 : i32
    return %c0_i32, %c0_i32_0 : i32, i32
  }
  func.func @transform_3(%arg0: i32) -> (i32, i32) {
    %c0_i32 = arith.constant 0 : i32
    %c0_i32_0 = arith.constant 0 : i32
    %c0_i32_1 = arith.constant 0 : i32
    return %c0_i32, %c0_i32_0 : i32, i32
  }
  func.func @transform_4(%arg0: i32) -> (i32, i32) {
    %c0_i32 = arith.constant 0 : i32
    %c0_i32_0 = arith.constant 0 : i32
    %c0_i32_1 = arith.constant 0 : i32
    return %c0_i32, %c0_i32_0 : i32, i32
  }
  func.func @transform_5(%arg0: i32) -> (i32, i32, i32) {
    %c0_i32 = arith.constant 0 : i32
    %c0_i32_0 = arith.constant 0 : i32
    %c0_i32_1 = arith.constant 0 : i32
    return %arg0, %c0_i32, %c0_i32_0 : i32, i32, i32
  }
  func.func @transform_6(%arg0: i32) -> (i32, i32, i32) {
    %c0_i32 = arith.constant 0 : i32
    %c0_i32_0 = arith.constant 0 : i32
    %c0_i32_1 = arith.constant 0 : i32
    return %arg0, %c0_i32, %c0_i32_0 : i32, i32, i32
  }
}

</mosaic_0001>

<llo_original>
// kernel: conv_lstm_cell.1
$region0: #{conv_lstm_cell.1}
  #allocation0 [shape = 'u32[]', space=smem, size = 0x4, offset = 0x4, fixed_abs, tag = 'smem constant byte address 0x4 - core index']
  #allocation1 [shape = 'u32[144,128]{1,0:T(1,128)}', space=vmem, size = 0x12000, scoped, tag = 'internal scratch']
  %s0 = inlined_call_operand.vmem [shape: bf16[2,256,324], index: 0, kind: input, shape index: {}]
  %s1 = inlined_call_operand.vmem [shape: bf16[324,128], index: 1, kind: input, shape index: {}]
  %s2 = inlined_call_operand.vmem [shape: f32[1,128], index: 2, kind: input, shape index: {}]
  %s3 = inlined_call_operand.vmem [shape: f32[256,64], index: 3, kind: input, shape index: {}]
  %s4 = inlined_call_operand.vmem [shape: f32[256,32], index: 4, kind: input, shape index: {}]
  %s5 = inlined_call_operand.vmem [shape: f32[2,256,32], index: 5, kind: input, shape index: {}]
  %s6 = inlined_call_operand.vmem [shape: f32[2,256,64], index: 6, kind: output, shape index: {}]
  %s7 = sld [smem:[#allocation0]]
  $region57: #{conv_lstm_cell.1} parent=0
    _
  %s9 = ssub.s32 1, %s7
  %s10 = scalar_select 0, %s9, %s7
  loop: start=0, step=1, limit=4
  $region2: #{conv_lstm_cell.1} parent=0 // loop_pre_header
    _
  $region3: #{conv_lstm_cell.1} parent=0 // loop_header
    %s12 = sphi 0, %s16
    %p13 = scmp.ge.s32.totalorder %s12, 4
    %s22 = sphi 0, %s24
    %s25 = sphi 0, %s22
    %s26 = sphi 0, %s25
    %s42 = sphi 0, %s26
    %s46 = sphi 0, %s46
    %s48 = sphi 0, %s46
    %s49 = sphi 0, %s48
    %s63 = sphi 0, %s49
    %s67 = sphi 0, %s67
    %s69 = sphi 0, %s67
    %s70 = sphi 0, %s69
    %s84 = sphi 0, %s70
    %s88 = sphi 0, %s88
    %s90 = sphi 0, %s88
    %s91 = sphi 0, %s90
    %s105 = sphi 0, %s91
    %s109 = sphi 0, %s109
    %s111 = sphi 0, %s109
    %s112 = sphi 0, %s111
    %s126 = sphi 0, %s112
    %s132 = sphi 0, %s134
    %s135 = sphi 0, %s132
    %s136 = sphi 0, %s135
    %s152 = sphi 0, %s136
    %s158 = sphi 0, %s160
    %s161 = sphi 0, %s158
    %s162 = sphi 0, %s161
    %s178 = sphi 0, %s162
  $region4: #{conv_lstm_cell.1} parent=0 // loop_header_branch
    %15 = sbr.rel (%p13) target = $region8
  $region5: #{conv_lstm_cell.1} parent=0 // loop_body
    %s17 = ssub.s32 %s12, 1
    %s18 = ssub.s32 %s12, 2
    %s19 = sadd.s32 %s12, 1
    %s20 = ssub.s32 %s12, %s19
    %p21 = scmp.eq.s32.totalorder %s20, 0
    %s23 = sadd.s32 %s22, 1
    %s24 = scalar_select %p21, %s22, %s23
    %p27 = pneg %p21
    %p28 = scmp.eq.s32.totalorder %s12, 1
    %p29 = por %p27, %p28
    %p30 = scmp.ne.s32.totalorder %s22, %s25
    %p31 = scmp.eq.s32.totalorder %s12, 0
    %p32 = por %p30, %p31
    %p33 = scmp.ne.s32.totalorder %s22, %s25
    %p34 = scmp.eq.s32.totalorder %s17, 1
    %p35 = por %p33, %p34
    %p36 = scmp.ne.s32.totalorder %s25, %s26
    %p37 = scmp.eq.s32.totalorder %s17, 0
    %p38 = por %p36, %p37
    %p39 = scmp.ne.s32.totalorder %s25, %s26
    %p40 = scmp.eq.s32.totalorder %s18, 1
    %p41 = por %p39, %p40
    %p43 = scmp.ne.s32.totalorder %s26, %s42
    %p44 = scmp.eq.s32.totalorder %s18, 0
    %p45 = por %p43, %p44
    %s47 = sadd.s32 %s46, 1
    %p50 = scmp.eq.s32.totalorder %s12, 1
    %p51 = scmp.ne.s32.totalorder %s46, %s48
    %p52 = scmp.eq.s32.totalorder %s12, 0
    %p53 = por %p51, %p52
    %p54 = scmp.ne.s32.totalorder %s46, %s48
    %p55 = scmp.eq.s32.totalorder %s17, 1
    %p56 = por %p54, %p55
    %p57 = scmp.ne.s32.totalorder %s48, %s49
    %p58 = scmp.eq.s32.totalorder %s17, 0
    %p59 = por %p57, %p58
    %p60 = scmp.ne.s32.totalorder %s48, %s49
    %p61 = scmp.eq.s32.totalorder %s18, 1
    %p62 = por %p60, %p61
    %p64 = scmp.ne.s32.totalorder %s49, %s63
    %p65 = scmp.eq.s32.totalorder %s18, 0
    %p66 = por %p64, %p65
    %s68 = sadd.s32 %s67, 1
    %p71 = scmp.eq.s32.totalorder %s12, 1
    %p72 = scmp.ne.s32.totalorder %s67, %s69
    %p73 = scmp.eq.s32.totalorder %s12, 0
    %p74 = por %p72, %p73
    %p75 = scmp.ne.s32.totalorder %s67, %s69
    %p76 = scmp.eq.s32.totalorder %s17, 1
    %p77 = por %p75, %p76
    %p78 = scmp.ne.s32.totalorder %s69, %s70
    %p79 = scmp.eq.s32.totalorder %s17, 0
    %p80 = por %p78, %p79
    %p81 = scmp.ne.s32.totalorder %s69, %s70
    %p82 = scmp.eq.s32.totalorder %s18, 1
    %p83 = por %p81, %p82
    %p85 = scmp.ne.s32.totalorder %s70, %s84
    %p86 = scmp.eq.s32.totalorder %s18, 0
    %p87 = por %p85, %p86
    %s89 = sadd.s32 %s88, 1
    %p92 = scmp.eq.s32.totalorder %s12, 1
    %p93 = scmp.ne.s32.totalorder %s88, %s90
    %p94 = scmp.eq.s32.totalorder %s12, 0
    %p95 = por %p93, %p94
    %p96 = scmp.ne.s32.totalorder %s88, %s90
    %p97 = scmp.eq.s32.totalorder %s17, 1
    %p98 = por %p96, %p97
    %p99 = scmp.ne.s32.totalorder %s90, %s91
    %p100 = scmp.eq.s32.totalorder %s17, 0
    %p101 = por %p99, %p100
    %p102 = scmp.ne.s32.totalorder %s90, %s91
    %p103 = scmp.eq.s32.totalorder %s18, 1
    %p104 = por %p102, %p103
    %p106 = scmp.ne.s32.totalorder %s91, %s105
    %p107 = scmp.eq.s32.totalorder %s18, 0
    %p108 = por %p106, %p107
    %s110 = sadd.s32 %s109, 1
    %p113 = scmp.eq.s32.totalorder %s12, 1
    %p114 = scmp.ne.s32.totalorder %s109, %s111
    %p115 = scmp.eq.s32.totalorder %s12, 0
    %p116 = por %p114, %p115
    %p117 = scmp.ne.s32.totalorder %s109, %s111
    %p118 = scmp.eq.s32.totalorder %s17, 1
    %p119 = por %p117, %p118
    %p120 = scmp.ne.s32.totalorder %s111, %s112
    %p121 = scmp.eq.s32.totalorder %s17, 0
    %p122 = por %p120, %p121
    %p123 = scmp.ne.s32.totalorder %s111, %s112
    %p124 = scmp.eq.s32.totalorder %s18, 1
    %p125 = por %p123, %p124
    %p127 = scmp.ne.s32.totalorder %s112, %s126
    %p128 = scmp.eq.s32.totalorder %s18, 0
    %p129 = por %p127, %p128
    %s130 = ssub.s32 %s12, %s19
    %p131 = scmp.eq.s32.totalorder %s130, 0
    %s133 = sadd.s32 %s132, 1
    %s134 = scalar_select %p131, %s132, %s133
    %p137 = pneg %p131
    %p138 = scmp.eq.s32.totalorder %s12, 1
    %p139 = por %p137, %p138
    %p140 = scmp.ne.s32.totalorder %s132, %s135
    %p141 = scmp.eq.s32.totalorder %s12, 0
    %p142 = por %p140, %p141
    %p143 = scmp.ne.s32.totalorder %s132, %s135
    %p144 = scmp.eq.s32.totalorder %s17, 1
    %p145 = por %p143, %p144
    %p146 = scmp.ne.s32.totalorder %s135, %s136
    %p147 = scmp.eq.s32.totalorder %s17, 0
    %p148 = por %p146, %p147
    %p149 = scmp.ne.s32.totalorder %s135, %s136
    %p150 = scmp.eq.s32.totalorder %s18, 1
    %p151 = por %p149, %p150
    %p153 = scmp.ne.s32.totalorder %s136, %s152
    %p154 = scmp.eq.s32.totalorder %s18, 0
    %p155 = por %p153, %p154
    %s156 = ssub.s32 %s12, %s19
    %p157 = scmp.eq.s32.totalorder %s156, 0
    %s159 = sadd.s32 %s158, 1
    %s160 = scalar_select %p157, %s158, %s159
    %p163 = pneg %p157
    %p164 = scmp.eq.s32.totalorder %s12, 1
    %p165 = por %p163, %p164
    %p166 = scmp.ne.s32.totalorder %s158, %s161
    %p167 = scmp.eq.s32.totalorder %s12, 0
    %p168 = por %p166, %p167
    %p169 = scmp.ne.s32.totalorder %s158, %s161
    %p170 = scmp.eq.s32.totalorder %s17, 1
    %p171 = por %p169, %p170
    %p172 = scmp.ne.s32.totalorder %s161, %s162
    %p173 = scmp.eq.s32.totalorder %s17, 0
    %p174 = por %p172, %p173
    %p175 = scmp.ne.s32.totalorder %s161, %s162
    %p176 = scmp.eq.s32.totalorder %s18, 1
    %p177 = por %p175, %p176
    %p179 = scmp.ne.s32.totalorder %s162, %s178
    %p180 = scmp.eq.s32.totalorder %s18, 0
    %p181 = por %p179, %p180
    %p182 = scmp.le.s32.totalorder 1, %s12
    %p183 = scmp.lt.s32.totalorder %s12, 3
    %p184 = pnand %p182, %p183
    %p185 = pneg %p184
    // Predicated region
    $region9: #{conv_lstm_cell.1} parent=5 // pred_check
      _
    $region10: #{conv_lstm_cell.1} parent=5 // pred_check_branch
      %187 = sbr.rel (%p184) target = $region12
    $region11: #{conv_lstm_cell.1} parent=5 // pred_region
      %s188 = ssub.s32 %s12, 1
      // Predicated region
      $region13: #{conv_lstm_cell.1} parent=11 // pred_check
        %p189 = pneg %p59
      $region14: #{conv_lstm_cell.1} parent=11 // pred_check_branch
        %191 = sbr.rel (%p189) target = $region16
      $region15: #{conv_lstm_cell.1} parent=11 // pred_region
        _
      $region16: #{conv_lstm_cell.1} parent=11 // pred_fallthru
        _
      // Predicated region
      $region17: #{conv_lstm_cell.1} parent=11 // pred_check
        %p192 = pneg %p80
      $region18: #{conv_lstm_cell.1} parent=11 // pred_check_branch
        %194 = sbr.rel (%p192) target = $region20
      $region19: #{conv_lstm_cell.1} parent=11 // pred_region
        _
      $region20: #{conv_lstm_cell.1} parent=11 // pred_fallthru
        _
      // Predicated region
      $region21: #{conv_lstm_cell.1} parent=11 // pred_check
        %p195 = pneg %p101
      $region22: #{conv_lstm_cell.1} parent=11 // pred_check_branch
        %197 = sbr.rel (%p195) target = $region24
      $region23: #{conv_lstm_cell.1} parent=11 // pred_region
        _
      $region24: #{conv_lstm_cell.1} parent=11 // pred_fallthru
        _
      // Predicated region
      $region25: #{conv_lstm_cell.1} parent=11 // pred_check
        %p198 = pneg %p122
      $region26: #{conv_lstm_cell.1} parent=11 // pred_check_branch
        %200 = sbr.rel (%p198) target = $region28
      $region27: #{conv_lstm_cell.1} parent=11 // pred_region
        _
      $region28: #{conv_lstm_cell.1} parent=11 // pred_fallthru
        _
    $region12: #{conv_lstm_cell.1} parent=5 // pred_fallthru
      _
    %p201 = scmp.lt.s32.totalorder %s12, 2
    // Predicated region
    $region29: #{conv_lstm_cell.1} parent=5 // pred_check
      %p202 = pneg %p201
    $region30: #{conv_lstm_cell.1} parent=5 // pred_check_branch
      %204 = sbr.rel (%p202) target = $region32
    $region31: #{conv_lstm_cell.1} parent=5 // pred_region
      // Predicated region
      $region33: #{conv_lstm_cell.1} parent=31 // pred_check
        %p205 = pneg %p32
      $region34: #{conv_lstm_cell.1} parent=31 // pred_check_branch
        %207 = sbr.rel (%p205) target = $region36
      $region35: #{conv_lstm_cell.1} parent=31 // pred_region
        %p208 = scmp.lt.s32.totalorder %s12, 1
        %s209 = scalar_select %p208, %s12, 1
        %s210 = smul.addr %s209, 96
        %s211 = smul.addr %s210, 4
        %s212 = scalar_lea.vmem %s0, %s211
      $region36: #{conv_lstm_cell.1} parent=31 // pred_fallthru
        _
      // Predicated region
      $region37: #{conv_lstm_cell.1} parent=31 // pred_check
        %p213 = pneg %p142
      $region38: #{conv_lstm_cell.1} parent=31 // pred_check_branch
        %215 = sbr.rel (%p213) target = $region40
      $region39: #{conv_lstm_cell.1} parent=31 // pred_region
        %p216 = scmp.lt.s32.totalorder %s12, 1
        %s217 = scalar_select %p216, %s12, 1
        %s218 = smul.addr %s217, 32
        %s219 = smul.addr %s218, 8
        %s220 = scalar_lea.vmem %s5, %s219
      $region40: #{conv_lstm_cell.1} parent=31 // pred_fallthru
        _
    $region32: #{conv_lstm_cell.1} parent=5 // pred_fallthru
      _
    %p221 = scmp.le.s32.totalorder 1, %s12
    %p222 = scmp.lt.s32.totalorder %s12, 3
    %p223 = pnand %p221, %p222
    %p224 = pneg %p223
    // Predicated region
    $region41: #{conv_lstm_cell.1} parent=5 // pred_check
      _
    $region42: #{conv_lstm_cell.1} parent=5 // pred_check_branch
      %226 = sbr.rel (%p223) target = $region44
    $region43: #{conv_lstm_cell.1} parent=5 // pred_region
      %s227 = ssub.s32 %s12, 1
      %p228 = scmp.lt.s32.totalorder %s17, 1
      %s229 = scalar_select %p228, %s17, 1
      %s230 = smul.addr %s229, 96
      %s231 = smul.addr %s230, 4
      %s232 = scalar_lea.vmem %s0, %s231
      %p233 = pneg %p38
      %p234 = pneg %p35
      %p235 = pneg %p59
      %p236 = pneg %p56
      %p237 = pneg %p80
      %p238 = pneg %p77
      %p239 = pneg %p101
      %p240 = pneg %p98
      %p241 = pneg %p122
      %p242 = pneg %p119
      %p243 = scmp.lt.s32.totalorder %s17, 1
      %s244 = scalar_select %p243, %s17, 1
      %s245 = smul.addr %s244, 32
      %s246 = smul.addr %s245, 8
      %s247 = scalar_lea.vmem %s5, %s246
      %p248 = pneg %p148
      %p249 = pneg %p145
      %p250 = pneg %p174
      %p251 = pneg %p171
      %p252 = scmp.lt.s32.totalorder %s17, 1
      %s253 = scalar_select %p252, %s17, 1
      %s254 = smul.addr %s253, 32
      %s255 = smul.addr %s254, 8
      %s256 = scalar_lea.vmem %s6, %s255
      %p257 = scmp.lt.s32.totalorder %s17, 1
      %s258 = scalar_select %p257, %s17, 1
      %s259 = smul.addr %s258, 96
      %s260 = smul.addr %s259, 4
      %s261 = scalar_lea.vmem %s0, %s260
      %p262 = scmp.lt.s32.totalorder %s17, 1
      %s263 = scalar_select %p262, %s17, 1
      %s264 = smul.addr %s263, 32
      %s265 = smul.addr %s264, 8
      %s266 = scalar_lea.vmem %s5, %s265
      %p267 = scmp.lt.s32.totalorder %s17, 1
      %s268 = scalar_select %p267, %s17, 1
      %s269 = smul.addr %s268, 32
      %s270 = smul.addr %s269, 8
      %s271 = scalar_lea.vmem %s6, %s270
      %v273 = vld [vmem:[%s261] sm:$0xff]
      %v274 = vld [vmem:[%s261 + $0x8] sm:$0xf]
      %v275 = vld [vmem:[%s261 + $0xc] sm:$0xff]
      %v276 = vld [vmem:[%s261 + $0x14] sm:$0xf]
      %v277 = vld [vmem:[%s261 + $0x18] sm:$0xff]
      %v278 = vld [vmem:[%s261 + $0x20] sm:$0xf]
      %v279 = vld [vmem:[%s261 + $0x24] sm:$0xff]
      %v280 = vld [vmem:[%s261 + $0x2c] sm:$0xf]
      %v281 = vld [vmem:[%s261 + $0x30] sm:$0xff]
      %v282 = vld [vmem:[%s261 + $0x38] sm:$0xf]
      %v283 = vld [vmem:[%s261 + $0x3c] sm:$0xff]
      %v284 = vld [vmem:[%s261 + $0x44] sm:$0xf]
      %v285 = vld [vmem:[%s261 + $0x48] sm:$0xff]
      %v286 = vld [vmem:[%s261 + $0x50] sm:$0xf]
      %v287 = vld [vmem:[%s261 + $0x54] sm:$0xff]
      %v288 = vld [vmem:[%s261 + $0x5c] sm:$0xf]
      %v289 = vld [vmem:[%s261 + $0x60] sm:$0xff]
      %v290 = vld [vmem:[%s261 + $0x68] sm:$0xf]
      %v291 = vld [vmem:[%s261 + $0x6c] sm:$0xff]
      %v292 = vld [vmem:[%s261 + $0x74] sm:$0xf]
      %v293 = vld [vmem:[%s261 + $0x78] sm:$0xff]
      %v294 = vld [vmem:[%s261 + $0x80] sm:$0xf]
      %v295 = vld [vmem:[%s261 + $0x84] sm:$0xff]
      %v296 = vld [vmem:[%s261 + $0x8c] sm:$0xf]
      %v297 = vld [vmem:[%s261 + $0x90] sm:$0xff]
      %v298 = vld [vmem:[%s261 + $0x98] sm:$0xf]
      %v299 = vld [vmem:[%s261 + $0x9c] sm:$0xff]
      %v300 = vld [vmem:[%s261 + $0xa4] sm:$0xf]
      %v301 = vld [vmem:[%s261 + $0xa8] sm:$0xff]
      %v302 = vld [vmem:[%s261 + $0xb0] sm:$0xf]
      %v303 = vld [vmem:[%s261 + $0xb4] sm:$0xff]
      %v304 = vld [vmem:[%s261 + $0xbc] sm:$0xf]
      %v305 = vld [vmem:[%s261 + $0xc0] sm:$0xff]
      %v306 = vld [vmem:[%s261 + $0xc8] sm:$0xf]
      %v307 = vld [vmem:[%s261 + $0xcc] sm:$0xff]
      %v308 = vld [vmem:[%s261 + $0xd4] sm:$0xf]
      %v309 = vld [vmem:[%s261 + $0xd8] sm:$0xff]
      %v310 = vld [vmem:[%s261 + $0xe0] sm:$0xf]
      %v311 = vld [vmem:[%s261 + $0xe4] sm:$0xff]
      %v312 = vld [vmem:[%s261 + $0xec] sm:$0xf]
      %v313 = vld [vmem:[%s261 + $0xf0] sm:$0xff]
      %v314 = vld [vmem:[%s261 + $0xf8] sm:$0xf]
      %v315 = vld [vmem:[%s261 + $0xfc] sm:$0xff]
      %v316 = vld [vmem:[%s261 + $0x104] sm:$0xf]
      %v317 = vld [vmem:[%s261 + $0x108] sm:$0xff]
      %v318 = vld [vmem:[%s261 + $0x110] sm:$0xf]
      %v319 = vld [vmem:[%s261 + $0x114] sm:$0xff]
      %v320 = vld [vmem:[%s261 + $0x11c] sm:$0xf]
      %v321 = vld [vmem:[%s261 + $0x120] sm:$0xff]
      %v322 = vld [vmem:[%s261 + $0x128] sm:$0xf]
      %v323 = vld [vmem:[%s261 + $0x12c] sm:$0xff]
      %v324 = vld [vmem:[%s261 + $0x134] sm:$0xf]
      %v325 = vld [vmem:[%s261 + $0x138] sm:$0xff]
      %v326 = vld [vmem:[%s261 + $0x140] sm:$0xf]
      %v327 = vld [vmem:[%s261 + $0x144] sm:$0xff]
      %v328 = vld [vmem:[%s261 + $0x14c] sm:$0xf]
      %v329 = vld [vmem:[%s261 + $0x150] sm:$0xff]
      %v330 = vld [vmem:[%s261 + $0x158] sm:$0xf]
      %v331 = vld [vmem:[%s261 + $0x15c] sm:$0xff]
      %v332 = vld [vmem:[%s261 + $0x164] sm:$0xf]
      %v333 = vld [vmem:[%s261 + $0x168] sm:$0xff]
      %v334 = vld [vmem:[%s261 + $0x170] sm:$0xf]
      %v335 = vld [vmem:[%s261 + $0x174] sm:$0xff]
      %v336 = vld [vmem:[%s261 + $0x17c] sm:$0xf]
      %v337 = vld [vmem:[%s1] sm:$0xf]
      %v338 = vld [vmem:[%s1 + $0x4] sm:$0xf]
      %v339 = vld [vmem:[%s1 + $0x8] sm:$0xf]
      %v340 = vld [vmem:[%s1 + $0xc] sm:$0xf]
      %v341 = vld [vmem:[%s1 + $0x10] sm:$0xf]
      %v342 = vld [vmem:[%s1 + $0x14] sm:$0xf]
      %v343 = vld [vmem:[%s1 + $0x18] sm:$0xf]
      %v344 = vld [vmem:[%s1 + $0x1c] sm:$0xf]
      %v345 = vld [vmem:[%s1 + $0x20] sm:$0xf]
      %v346 = vld [vmem:[%s1 + $0x24] sm:$0xf]
      %v347 = vld [vmem:[%s1 + $0x28] sm:$0xf]
      %v348 = vld [vmem:[%s1 + $0x2c] sm:$0xf]
      %v349 = vld [vmem:[%s1 + $0x30] sm:$0xf]
      %v350 = vld [vmem:[%s1 + $0x34] sm:$0xf]
      %v351 = vld [vmem:[%s1 + $0x38] sm:$0xf]
      %v352 = vld [vmem:[%s1 + $0x3c] sm:$0xf]
      %v353 = vld [vmem:[%s1 + $0x40] sm:$0xf]
      %v354 = vld [vmem:[%s1 + $0x44] sm:$0xf]
      %v355 = vld [vmem:[%s1 + $0x48] sm:$0xf]
      %v356 = vld [vmem:[%s1 + $0x4c] sm:$0xf]
      %v357 = vld [vmem:[%s1 + $0x50] sm:$0xf]
      %v358 = vld [vmem:[%s1 + $0x54] sm:$0xf]
      %v359 = vld [vmem:[%s1 + $0x58] sm:$0xf]
      %v360 = vld [vmem:[%s1 + $0x5c] sm:$0xf]
      %v361 = vld [vmem:[%s1 + $0x60] sm:$0xf]
      %v362 = vld [vmem:[%s1 + $0x64] sm:$0xf]
      %v363 = vld [vmem:[%s1 + $0x68] sm:$0xf]
      %v364 = vld [vmem:[%s1 + $0x6c] sm:$0xf]
      %v365 = vld [vmem:[%s1 + $0x70] sm:$0xf]
      %v366 = vld [vmem:[%s1 + $0x74] sm:$0xf]
      %v367 = vld [vmem:[%s1 + $0x78] sm:$0xf]
      %v368 = vld [vmem:[%s1 + $0x7c] sm:$0xf]
      %v369 = vld [vmem:[%s1 + $0x80] sm:$0xf]
      %v370 = vld [vmem:[%s1 + $0x84] sm:$0xf]
      %v371 = vld [vmem:[%s1 + $0x88] sm:$0xf]
      %v372 = vld [vmem:[%s1 + $0x8c] sm:$0xf]
      %v373 = vld [vmem:[%s1 + $0x90] sm:$0xf]
      %v374 = vld [vmem:[%s1 + $0x94] sm:$0xf]
      %v375 = vld [vmem:[%s1 + $0x98] sm:$0xf]
      %v376 = vld [vmem:[%s1 + $0x9c] sm:$0xf]
      %v377 = vld [vmem:[%s1 + $0xa0] sm:$0x3]
      %v378 = vld [vmem:[%s2] sm:$0x1]
      %v380 = vlaneseq
      %v381 = vshrl.u32 %v380, 7
      %v382 = vsub.s32 0, %v381
      %v383 = vrot.slane %v378, %v382
      %v449 = vunpack.c.l.b16 %v273
      %v450 = vunpack.c.h.b16 %v273
      %v451 = vunpack.c.l.b16 %v274
      %v452 = vunpack.c.l.b16 %v275
      %v453 = vunpack.c.h.b16 %v275
      %v454 = vunpack.c.l.b16 %v276
      %v455 = vunpack.c.l.b16 %v277
      %v456 = vunpack.c.h.b16 %v277
      %v457 = vunpack.c.l.b16 %v278
      %v458 = vunpack.c.l.b16 %v279
      %v459 = vunpack.c.h.b16 %v279
      %v460 = vunpack.c.l.b16 %v280
      %v461 = vunpack.c.l.b16 %v281
      %v462 = vunpack.c.h.b16 %v281
      %v463 = vunpack.c.l.b16 %v282
      %v464 = vunpack.c.l.b16 %v283
      %v465 = vunpack.c.h.b16 %v283
      %v466 = vunpack.c.l.b16 %v284
      %v467 = vunpack.c.l.b16 %v285
      %v468 = vunpack.c.h.b16 %v285
      %v469 = vunpack.c.l.b16 %v286
      %v470 = vunpack.c.l.b16 %v287
      %v471 = vunpack.c.h.b16 %v287
      %v472 = vunpack.c.l.b16 %v288
      %v473 = vunpack.c.l.b16 %v289
      %v474 = vunpack.c.h.b16 %v289
      %v475 = vunpack.c.l.b16 %v290
      %v476 = vunpack.c.l.b16 %v291
      %v477 = vunpack.c.h.b16 %v291
      %v478 = vunpack.c.l.b16 %v292
      %v479 = vunpack.c.l.b16 %v293
      %v480 = vunpack.c.h.b16 %v293
      %v481 = vunpack.c.l.b16 %v294
      %v482 = vunpack.c.l.b16 %v295
      %v483 = vunpack.c.h.b16 %v295
      %v484 = vunpack.c.l.b16 %v296
      %v485 = vunpack.c.l.b16 %v297
      %v486 = vunpack.c.h.b16 %v297
      %v487 = vunpack.c.l.b16 %v298
      %v488 = vunpack.c.l.b16 %v299
      %v489 = vunpack.c.h.b16 %v299
      %v490 = vunpack.c.l.b16 %v300
      %v491 = vunpack.c.l.b16 %v301
      %v492 = vunpack.c.h.b16 %v301
      %v493 = vunpack.c.l.b16 %v302
      %v494 = vunpack.c.l.b16 %v303
      %v495 = vunpack.c.h.b16 %v303
      %v496 = vunpack.c.l.b16 %v304
      %v497 = vunpack.c.l.b16 %v305
      %v498 = vunpack.c.h.b16 %v305
      %v499 = vunpack.c.l.b16 %v306
      %v500 = vunpack.c.l.b16 %v307
      %v501 = vunpack.c.h.b16 %v307
      %v502 = vunpack.c.l.b16 %v308
      %v503 = vunpack.c.l.b16 %v309
      %v504 = vunpack.c.h.b16 %v309
      %v505 = vunpack.c.l.b16 %v310
      %v506 = vunpack.c.l.b16 %v311
      %v507 = vunpack.c.h.b16 %v311
      %v508 = vunpack.c.l.b16 %v312
      %v509 = vunpack.c.l.b16 %v313
      %v510 = vunpack.c.h.b16 %v313
      %v511 = vunpack.c.l.b16 %v314
      %v512 = vunpack.c.l.b16 %v315
      %v513 = vunpack.c.h.b16 %v315
      %v514 = vunpack.c.l.b16 %v316
      %v515 = vunpack.c.l.b16 %v317
      %v516 = vunpack.c.h.b16 %v317
      %v517 = vunpack.c.l.b16 %v318
      %v518 = vunpack.c.l.b16 %v319
      %v519 = vunpack.c.h.b16 %v319
      %v520 = vunpack.c.l.b16 %v320
      %v521 = vunpack.c.l.b16 %v321
      %v522 = vunpack.c.h.b16 %v321
      %v523 = vunpack.c.l.b16 %v322
      %v524 = vunpack.c.l.b16 %v323
      %v525 = vunpack.c.h.b16 %v323
      %v526 = vunpack.c.l.b16 %v324
      %v527 = vunpack.c.l.b16 %v325
      %v528 = vunpack.c.h.b16 %v325
      %v529 = vunpack.c.l.b16 %v326
      %v530 = vunpack.c.l.b16 %v327
      %v531 = vunpack.c.h.b16 %v327
      %v532 = vunpack.c.l.b16 %v328
      %v533 = vunpack.c.l.b16 %v329
      %v534 = vunpack.c.h.b16 %v329
      %v535 = vunpack.c.l.b16 %v330
      %v536 = vunpack.c.l.b16 %v331
      %v537 = vunpack.c.h.b16 %v331
      %v538 = vunpack.c.l.b16 %v332
      %v539 = vunpack.c.l.b16 %v333
      %v540 = vunpack.c.h.b16 %v333
      %v541 = vunpack.c.l.b16 %v334
      %v542 = vunpack.c.l.b16 %v335
      %v543 = vunpack.c.h.b16 %v335
      %v544 = vunpack.c.l.b16 %v336
      %v545 = vpack.c.b16 %v452, %v449
      %v546 = vpack.c.b16 %v453, %v450
      %v547 = vpack.c.b16 %v454, %v451
      %v548 = vpack.c.b16 %v458, %v455
      %v549 = vpack.c.b16 %v459, %v456
      %v550 = vpack.c.b16 %v460, %v457
      %v551 = vpack.c.b16 %v464, %v461
      %v552 = vpack.c.b16 %v465, %v462
      %v553 = vpack.c.b16 %v466, %v463
      %v554 = vpack.c.b16 %v470, %v467
      %v555 = vpack.c.b16 %v471, %v468
      %v556 = vpack.c.b16 %v472, %v469
      %v557 = vpack.c.b16 %v476, %v473
      %v558 = vpack.c.b16 %v477, %v474
      %v559 = vpack.c.b16 %v478, %v475
      %v560 = vpack.c.b16 %v482, %v479
      %v561 = vpack.c.b16 %v483, %v480
      %v562 = vpack.c.b16 %v484, %v481
      %v563 = vpack.c.b16 %v488, %v485
      %v564 = vpack.c.b16 %v489, %v486
      %v565 = vpack.c.b16 %v490, %v487
      %v566 = vpack.c.b16 %v494, %v491
      %v567 = vpack.c.b16 %v495, %v492
      %v568 = vpack.c.b16 %v496, %v493
      %v569 = vpack.c.b16 %v500, %v497
      %v570 = vpack.c.b16 %v501, %v498
      %v571 = vpack.c.b16 %v502, %v499
      %v572 = vpack.c.b16 %v506, %v503
      %v573 = vpack.c.b16 %v507, %v504
      %v574 = vpack.c.b16 %v508, %v505
      %v575 = vpack.c.b16 %v512, %v509
      %v576 = vpack.c.b16 %v513, %v510
      %v577 = vpack.c.b16 %v514, %v511
      %v578 = vpack.c.b16 %v518, %v515
      %v579 = vpack.c.b16 %v519, %v516
      %v580 = vpack.c.b16 %v520, %v517
      %v581 = vpack.c.b16 %v524, %v521
      %v582 = vpack.c.b16 %v525, %v522
      %v583 = vpack.c.b16 %v526, %v523
      %v584 = vpack.c.b16 %v530, %v527
      %v585 = vpack.c.b16 %v531, %v528
      %v586 = vpack.c.b16 %v532, %v529
      %v587 = vpack.c.b16 %v536, %v533
      %v588 = vpack.c.b16 %v537, %v534
      %v589 = vpack.c.b16 %v538, %v535
      %v590 = vpack.c.b16 %v542, %v539
      %v591 = vpack.c.b16 %v543, %v540
      %v592 = vpack.c.b16 %v544, %v541
      %v666 = vunpack.c.l.b16 %v337
      %v667 = vunpack.c.l.b16 %v338
      %v668 = vunpack.c.l.b16 %v339
      %v669 = vunpack.c.l.b16 %v340
      %v670 = vunpack.c.l.b16 %v341
      %v671 = vunpack.c.l.b16 %v342
      %v672 = vunpack.c.l.b16 %v343
      %v673 = vunpack.c.l.b16 %v344
      %v674 = vunpack.c.l.b16 %v345
      %v675 = vunpack.c.l.b16 %v346
      %v676 = vunpack.c.l.b16 %v347
      %v677 = vunpack.c.l.b16 %v348
      %v678 = vunpack.c.l.b16 %v349
      %v679 = vunpack.c.l.b16 %v350
      %v680 = vunpack.c.l.b16 %v351
      %v681 = vunpack.c.l.b16 %v352
      %v682 = vunpack.c.l.b16 %v353
      %v683 = vunpack.c.l.b16 %v354
      %v684 = vunpack.c.l.b16 %v355
      %v685 = vunpack.c.l.b16 %v356
      %v686 = vunpack.c.l.b16 %v357
      %v687 = vunpack.c.l.b16 %v358
      %v688 = vunpack.c.l.b16 %v359
      %v689 = vunpack.c.l.b16 %v360
      %v690 = vunpack.c.l.b16 %v361
      %v691 = vunpack.c.l.b16 %v362
      %v692 = vunpack.c.l.b16 %v363
      %v693 = vunpack.c.l.b16 %v364
      %v694 = vunpack.c.l.b16 %v365
      %v695 = vunpack.c.l.b16 %v366
      %v696 = vunpack.c.l.b16 %v367
      %v697 = vunpack.c.l.b16 %v368
      %v698 = vunpack.c.l.b16 %v369
      %v699 = vunpack.c.l.b16 %v370
      %v700 = vunpack.c.l.b16 %v371
      %v701 = vunpack.c.l.b16 %v372
      %v702 = vunpack.c.l.b16 %v373
      %v703 = vunpack.c.l.b16 %v374
      %v704 = vunpack.c.l.b16 %v375
      %v705 = vunpack.c.l.b16 %v376
      %v706 = vunpack.c.l.b16 %v377
      %v707 = vpack.c.b16 %v667, %v666
      %v708 = vpack.c.b16 %v669, %v668
      %v709 = vpack.c.b16 %v671, %v670
      %v710 = vpack.c.b16 %v673, %v672
      %v711 = vpack.c.b16 %v675, %v674
      %v712 = vpack.c.b16 %v677, %v676
      %v713 = vpack.c.b16 %v679, %v678
      %v714 = vpack.c.b16 %v681, %v680
      %v715 = vpack.c.b16 %v683, %v682
      %v716 = vpack.c.b16 %v685, %v684
      %v717 = vpack.c.b16 %v687, %v686
      %v718 = vpack.c.b16 %v689, %v688
      %v719 = vpack.c.b16 %v691, %v690
      %v720 = vpack.c.b16 %v693, %v692
      %v721 = vpack.c.b16 %v695, %v694
      %v722 = vpack.c.b16 %v697, %v696
      %v723 = vpack.c.b16 %v699, %v698
      %v724 = vpack.c.b16 %v701, %v700
      %v725 = vpack.c.b16 %v703, %v702
      %v726 = vpack.c.b16 %v705, %v704
      %v727 = vpack.c.b16 %v706, %v706
      %vm748 = vcmask 556032
      %v750 = vsel %vm748, %v547, 0
      %v753 = vsel %vm748, %v550, 0
      %v756 = vsel %vm748, %v553, 0
      %v759 = vsel %vm748, %v556, 0
      %v762 = vsel %vm748, %v559, 0
      %v765 = vsel %vm748, %v562, 0
      %v768 = vsel %vm748, %v565, 0
      %v771 = vsel %vm748, %v568, 0
      %v774 = vsel %vm748, %v571, 0
      %v777 = vsel %vm748, %v574, 0
      %v780 = vsel %vm748, %v577, 0
      %v783 = vsel %vm748, %v580, 0
      %v786 = vsel %vm748, %v583, 0
      %v789 = vsel %vm748, %v586, 0
      %v792 = vsel %vm748, %v589, 0
      %v795 = vsel %vm748, %v592, 0
      %vm797 = vcmask 1041408
      %v799 = vsel %vm797, %v727, 0
      %801 = vmatprep.subr.bf16.mxu0 0
      %802 = vmatpush1.bf16.msra.mxu0 %v707
      %803 = vmatprep.subr.bf16.mxu0 0
      %804 = vmatpush1.bf16.msra.mxu0 %v708
      %805 = vmatprep.subr.bf16.mxu0 0
      %806 = vmatpush1.bf16.msra.mxu0 %v709
      %807 = vmatprep.subr.bf16.mxu0 0
      %808 = vmatpush1.bf16.msra.mxu0 %v710
      %809 = vmatprep.subr.bf16.mxu0 0
      %810 = vmatpush1.bf16.msra.mxu0 %v711
      %811 = vmatprep.subr.bf16.mxu0 0
      %812 = vmatpush1.bf16.msra.mxu0 %v712
      %813 = vmatprep.subr.bf16.mxu0 0
      %814 = vmatpush1.bf16.msra.mxu0 %v713
      %815 = vmatprep.subr.bf16.mxu0 0
      %816 = vmatpush1.bf16.msra.mxu0 %v714
      %817 = vmatprep.subr.bf16.mxu0 0
      %818 = vmatpush1.bf16.msra.mxu0 %v715
      %819 = vmatprep.subr.bf16.mxu0 0
      %820 = vmatpush1.bf16.msra.mxu0 %v716
      %821 = vmatprep.subr.bf16.mxu0 0
      %822 = vmatpush1.bf16.msra.mxu0 %v717
      %823 = vmatprep.subr.bf16.mxu0 0
      %824 = vmatpush1.bf16.msra.mxu0 %v718
      %825 = vmatprep.subr.bf16.mxu0 0
      %826 = vmatpush1.bf16.msra.mxu0 %v719
      %827 = vmatprep.subr.bf16.mxu0 0
      %828 = vmatpush1.bf16.msra.mxu0 %v720
      %829 = vmatprep.subr.bf16.mxu0 0
      %830 = vmatpush1.bf16.msra.mxu0 %v721
      %831 = vmatprep.subr.bf16.mxu0 0
      %832 = vmatpush1.bf16.msra.mxu0 %v722
      %833 = vmatprep.mubr.bf16.mxu0 %v546
      %834 = vmatmul.mubr.bf16.gmra.mrb[0].mxu0 %v545
      %v835 = vpop.f32.mrb[0].mxu0
      %v836 = vadd.f32 %v383, %v835
      %v837 = vpop.f32.mrb[0].mxu0
      %v838 = vpop.f32.mrb[0].mxu0
      %v839 = vadd.f32 %v383, %v838
      %v840 = vpop.f32.mrb[0].mxu0
      %841 = vmatprep.mubr.bf16.mxu0 %v549
      %842 = vmatmul.mubr.bf16.gmra.mrb[0].mxu0 %v548
      %v843 = vpop.f32.mrb[0].mxu0
      %v844 = vadd.f32 %v383, %v843
      %v845 = vpop.f32.mrb[0].mxu0
      %v846 = vpop.f32.mrb[0].mxu0
      %v847 = vadd.f32 %v383, %v846
      %v848 = vpop.f32.mrb[0].mxu0
      %849 = vmatprep.mubr.bf16.mxu0 %v552
      %850 = vmatmul.mubr.bf16.gmra.mrb[0].mxu0 %v551
      %v851 = vpop.f32.mrb[0].mxu0
      %v852 = vadd.f32 %v383, %v851
      %v853 = vpop.f32.mrb[0].mxu0
      %v854 = vpop.f32.mrb[0].mxu0
      %v855 = vadd.f32 %v383, %v854
      %v856 = vpop.f32.mrb[0].mxu0
      %857 = vmatprep.mubr.bf16.mxu0 %v555
      %858 = vmatmul.mubr.bf16.gmra.mrb[0].mxu0 %v554
      %v859 = vpop.f32.mrb[0].mxu0
      %v860 = vadd.f32 %v383, %v859
      %v861 = vpop.f32.mrb[0].mxu0
      %v862 = vpop.f32.mrb[0].mxu0
      %v863 = vadd.f32 %v383, %v862
      %v864 = vpop.f32.mrb[0].mxu0
      %865 = vmatprep.mubr.bf16.mxu0 %v558
      %866 = vmatmul.mubr.bf16.gmra.mrb[0].mxu0 %v557
      %v867 = vpop.f32.mrb[0].mxu0
      %v868 = vadd.f32 %v383, %v867
      %v869 = vpop.f32.mrb[0].mxu0
      %v870 = vpop.f32.mrb[0].mxu0
      %v871 = vadd.f32 %v383, %v870
      %v872 = vpop.f32.mrb[0].mxu0
      %873 = vmatprep.mubr.bf16.mxu0 %v561
      %874 = vmatmul.mubr.bf16.gmra.mrb[0].mxu0 %v560
      %v875 = vpop.f32.mrb[0].mxu0
      %v876 = vadd.f32 %v383, %v875
      %v877 = vpop.f32.mrb[0].mxu0
      %v878 = vpop.f32.mrb[0].mxu0
      %v879 = vadd.f32 %v383, %v878
      %v880 = vpop.f32.mrb[0].mxu0
      %881 = vmatprep.mubr.bf16.mxu0 %v564
      %882 = vmatmul.mubr.bf16.gmra.mrb[0].mxu0 %v563
      %v883 = vpop.f32.mrb[0].mxu0
      %v884 = vadd.f32 %v383, %v883
      %v885 = vpop.f32.mrb[0].mxu0
      %v886 = vpop.f32.mrb[0].mxu0
      %v887 = vadd.f32 %v383, %v886
      %v888 = vpop.f32.mrb[0].mxu0
      %889 = vmatprep.mubr.bf16.mxu0 %v567
      %890 = vmatmul.mubr.bf16.gmra.mrb[0].mxu0 %v566
      %v891 = vpop.f32.mrb[0].mxu0
      %v892 = vadd.f32 %v383, %v891
      %v893 = vpop.f32.mrb[0].mxu0
      %v894 = vpop.f32.mrb[0].mxu0
      %v895 = vadd.f32 %v383, %v894
      %v896 = vpop.f32.mrb[0].mxu0
      %897 = vmatprep.mubr.bf16.mxu0 %v570
      %898 = vmatmul.mubr.bf16.gmra.mrb[0].mxu0 %v569
      %v899 = vpop.f32.mrb[0].mxu0
      %v900 = vadd.f32 %v383, %v899
      %v901 = vpop.f32.mrb[0].mxu0
      %v902 = vpop.f32.mrb[0].mxu0
      %v903 = vadd.f32 %v383, %v902
      %v904 = vpop.f32.mrb[0].mxu0
      %905 = vmatprep.mubr.bf16.mxu0 %v573
      %906 = vmatmul.mubr.bf16.gmra.mrb[0].mxu0 %v572
      %v907 = vpop.f32.mrb[0].mxu0
      %v908 = vadd.f32 %v383, %v907
      %v909 = vpop.f32.mrb[0].mxu0
      %v910 = vpop.f32.mrb[0].mxu0
      %v911 = vadd.f32 %v383, %v910
      %v912 = vpop.f32.mrb[0].mxu0
      %913 = vmatprep.mubr.bf16.mxu0 %v576
      %914 = vmatmul.mubr.bf16.gmra.mrb[0].mxu0 %v575
      %v915 = vpop.f32.mrb[0].mxu0
      %v916 = vadd.f32 %v383, %v915
      %v917 = vpop.f32.mrb[0].mxu0
      %v918 = vpop.f32.mrb[0].mxu0
      %v919 = vadd.f32 %v383, %v918
      %v920 = vpop.f32.mrb[0].mxu0
      %921 = vmatprep.mubr.bf16.mxu0 %v579
      %922 = vmatmul.mubr.bf16.gmra.mrb[0].mxu0 %v578
      %v923 = vpop.f32.mrb[0].mxu0
      %v924 = vadd.f32 %v383, %v923
      %v925 = vpop.f32.mrb[0].mxu0
      %v926 = vpop.f32.mrb[0].mxu0
      %v927 = vadd.f32 %v383, %v926
      %v928 = vpop.f32.mrb[0].mxu0
      %929 = vmatprep.mubr.bf16.mxu0 %v582
      %930 = vmatmul.mubr.bf16.gmra.mrb[0].mxu0 %v581
      %v931 = vpop.f32.mrb[0].mxu0
      %v932 = vadd.f32 %v383, %v931
      %v933 = vpop.f32.mrb[0].mxu0
      %v934 = vpop.f32.mrb[0].mxu0
      %v935 = vadd.f32 %v383, %v934
      %v936 = vpop.f32.mrb[0].mxu0
      %937 = vmatprep.mubr.bf16.mxu0 %v585
      %938 = vmatmul.mubr.bf16.gmra.mrb[0].mxu0 %v584
      %v939 = vpop.f32.mrb[0].mxu0
      %v940 = vadd.f32 %v383, %v939
      %v941 = vpop.f32.mrb[0].mxu0
      %v942 = vpop.f32.mrb[0].mxu0
      %v943 = vadd.f32 %v383, %v942
      %v944 = vpop.f32.mrb[0].mxu0
      %945 = vmatprep.mubr.bf16.mxu0 %v588
      %946 = vmatmul.mubr.bf16.gmra.mrb[0].mxu0 %v587
      %v947 = vpop.f32.mrb[0].mxu0
      %v948 = vadd.f32 %v383, %v947
      %v949 = vpop.f32.mrb[0].mxu0
      %v950 = vpop.f32.mrb[0].mxu0
      %v951 = vadd.f32 %v383, %v950
      %v952 = vpop.f32.mrb[0].mxu0
      %953 = vmatprep.mubr.bf16.mxu0 %v591
      %954 = vmatmul.mubr.bf16.gmra.mrb[0].mxu0 %v590
      %v955 = vpop.f32.mrb[0].mxu0
      %v956 = vadd.f32 %v383, %v955
      %v957 = vpop.f32.mrb[0].mxu0
      %v958 = vpop.f32.mrb[0].mxu0
      %v959 = vadd.f32 %v383, %v958
      %v960 = vpop.f32.mrb[0].mxu0
      %961 = vdwg.mxu0
      %962 = vmatprep.subr.bf16.mxu0 0
      %963 = vmatpush1.bf16.msra.mxu0 %v723
      %964 = vmatprep.subr.bf16.mxu0 0
      %965 = vmatpush1.bf16.msra.mxu0 %v724
      %966 = vmatprep.subr.bf16.mxu0 0
      %967 = vmatpush1.bf16.msra.mxu0 %v725
      %968 = vmatprep.subr.bf16.mxu0 0
      %969 = vmatpush1.bf16.msra.mxu0 %v726
      %970 = vmatprep.subr.bf16.mxu0 0
      %971 = vmatpush1.bf16.msra.mxu0 %v799
      %972 = vmatprep.subr.bf16.mxu0 0
      %973 = vmatpush1.bf16.msra.mxu0 0
      %974 = vmatprep.subr.bf16.mxu0 0
      %975 = vmatpush1.bf16.msra.mxu0 0
      %976 = vmatprep.subr.bf16.mxu0 0
      %977 = vmatpush1.bf16.msra.mxu0 0
      %978 = vmatprep.subr.bf16.mxu0 0
      %979 = vmatpush1.bf16.msra.mxu0 0
      %980 = vmatprep.subr.bf16.mxu0 0
      %981 = vmatpush1.bf16.msra.mxu0 0
      %982 = vmatprep.subr.bf16.mxu0 0
      %983 = vmatpush1.bf16.msra.mxu0 0
      %984 = vmatprep.subr.bf16.mxu0 0
      %985 = vmatpush1.bf16.msra.mxu0 0
      %986 = vmatprep.subr.bf16.mxu0 0
      %987 = vmatpush1.bf16.msra.mxu0 0
      %988 = vmatprep.subr.bf16.mxu0 0
      %989 = vmatpush1.bf16.msra.mxu0 0
      %990 = vmatprep.subr.bf16.mxu0 0
      %991 = vmatpush1.bf16.msra.mxu0 0
      %992 = vmatprep.subr.bf16.mxu0 0
      %993 = vmatpush1.bf16.msra.mxu0 0
      %994 = vmatprep.mubr.bf16.mxu0 0
      %995 = vmatmul.mubr.bf16.gmra.mrb[0].mxu0 %v750
      %v996 = vpop.f32.mrb[0].mxu0
      %v997 = vadd.f32 %v836, %v996
      %v998 = vpop.f32.mrb[0].mxu0
      %v999 = vpop.f32.mrb[0].mxu0
      %v1000 = vadd.f32 %v839, %v999
      %v1001 = vpop.f32.mrb[0].mxu0
      %1002 = vmatprep.mubr.bf16.mxu0 0
      %1003 = vmatmul.mubr.bf16.gmra.mrb[0].mxu0 %v753
      %v1004 = vpop.f32.mrb[0].mxu0
      %v1005 = vadd.f32 %v844, %v1004
      %v1006 = vpop.f32.mrb[0].mxu0
      %v1007 = vpop.f32.mrb[0].mxu0
      %v1008 = vadd.f32 %v847, %v1007
      %v1009 = vpop.f32.mrb[0].mxu0
      %1010 = vmatprep.mubr.bf16.mxu0 0
      %1011 = vmatmul.mubr.bf16.gmra.mrb[0].mxu0 %v756
      %v1012 = vpop.f32.mrb[0].mxu0
      %v1013 = vadd.f32 %v852, %v1012
      %v1014 = vpop.f32.mrb[0].mxu0
      %v1015 = vpop.f32.mrb[0].mxu0
      %v1016 = vadd.f32 %v855, %v1015
      %v1017 = vpop.f32.mrb[0].mxu0
      %1018 = vmatprep.mubr.bf16.mxu0 0
      %1019 = vmatmul.mubr.bf16.gmra.mrb[0].mxu0 %v759
      %v1020 = vpop.f32.mrb[0].mxu0
      %v1021 = vadd.f32 %v860, %v1020
      %v1022 = vpop.f32.mrb[0].mxu0
      %v1023 = vpop.f32.mrb[0].mxu0
      %v1024 = vadd.f32 %v863, %v1023
      %v1025 = vpop.f32.mrb[0].mxu0
      %1026 = vmatprep.mubr.bf16.mxu0 0
      %1027 = vmatmul.mubr.bf16.gmra.mrb[0].mxu0 %v762
      %v1028 = vpop.f32.mrb[0].mxu0
      %v1029 = vadd.f32 %v868, %v1028
      %v1030 = vpop.f32.mrb[0].mxu0
      %v1031 = vpop.f32.mrb[0].mxu0
      %v1032 = vadd.f32 %v871, %v1031
      %v1033 = vpop.f32.mrb[0].mxu0
      %1034 = vmatprep.mubr.bf16.mxu0 0
      %1035 = vmatmul.mubr.bf16.gmra.mrb[0].mxu0 %v765
      %v1036 = vpop.f32.mrb[0].mxu0
      %v1037 = vadd.f32 %v876, %v1036
      %v1038 = vpop.f32.mrb[0].mxu0
      %v1039 = vpop.f32.mrb[0].mxu0
      %v1040 = vadd.f32 %v879, %v1039
      %v1041 = vpop.f32.mrb[0].mxu0
      %1042 = vmatprep.mubr.bf16.mxu0 0
      %1043 = vmatmul.mubr.bf16.gmra.mrb[0].mxu0 %v768
      %v1044 = vpop.f32.mrb[0].mxu0
      %v1045 = vadd.f32 %v884, %v1044
      %v1046 = vpop.f32.mrb[0].mxu0
      %v1047 = vpop.f32.mrb[0].mxu0
      %v1048 = vadd.f32 %v887, %v1047
      %v1049 = vpop.f32.mrb[0].mxu0
      %1050 = vmatprep.mubr.bf16.mxu0 0
      %1051 = vmatmul.mubr.bf16.gmra.mrb[0].mxu0 %v771
      %v1052 = vpop.f32.mrb[0].mxu0
      %v1053 = vadd.f32 %v892, %v1052
      %v1054 = vpop.f32.mrb[0].mxu0
      %v1055 = vpop.f32.mrb[0].mxu0
      %v1056 = vadd.f32 %v895, %v1055
      %v1057 = vpop.f32.mrb[0].mxu0
      %1058 = vmatprep.mubr.bf16.mxu0 0
      %1059 = vmatmul.mubr.bf16.gmra.mrb[0].mxu0 %v774
      %v1060 = vpop.f32.mrb[0].mxu0
      %v1061 = vadd.f32 %v900, %v1060
      %v1062 = vpop.f32.mrb[0].mxu0
      %v1063 = vpop.f32.mrb[0].mxu0
      %v1064 = vadd.f32 %v903, %v1063
      %v1065 = vpop.f32.mrb[0].mxu0
      %1066 = vmatprep.mubr.bf16.mxu0 0
      %1067 = vmatmul.mubr.bf16.gmra.mrb[0].mxu0 %v777
      %v1068 = vpop.f32.mrb[0].mxu0
      %v1069 = vadd.f32 %v908, %v1068
      %v1070 = vpop.f32.mrb[0].mxu0
      %v1071 = vpop.f32.mrb[0].mxu0
      %v1072 = vadd.f32 %v911, %v1071
      %v1073 = vpop.f32.mrb[0].mxu0
      %1074 = vmatprep.mubr.bf16.mxu0 0
      %1075 = vmatmul.mubr.bf16.gmra.mrb[0].mxu0 %v780
      %v1076 = vpop.f32.mrb[0].mxu0
      %v1077 = vadd.f32 %v916, %v1076
      %v1078 = vpop.f32.mrb[0].mxu0
      %v1079 = vpop.f32.mrb[0].mxu0
      %v1080 = vadd.f32 %v919, %v1079
      %v1081 = vpop.f32.mrb[0].mxu0
      %1082 = vmatprep.mubr.bf16.mxu0 0
      %1083 = vmatmul.mubr.bf16.gmra.mrb[0].mxu0 %v783
      %v1084 = vpop.f32.mrb[0].mxu0
      %v1085 = vadd.f32 %v924, %v1084
      %v1086 = vpop.f32.mrb[0].mxu0
      %v1087 = vpop.f32.mrb[0].mxu0
      %v1088 = vadd.f32 %v927, %v1087
      %v1089 = vpop.f32.mrb[0].mxu0
      %1090 = vmatprep.mubr.bf16.mxu0 0
      %1091 = vmatmul.mubr.bf16.gmra.mrb[0].mxu0 %v786
      %v1092 = vpop.f32.mrb[0].mxu0
      %v1093 = vadd.f32 %v932, %v1092
      %v1094 = vpop.f32.mrb[0].mxu0
      %v1095 = vpop.f32.mrb[0].mxu0
      %v1096 = vadd.f32 %v935, %v1095
      %v1097 = vpop.f32.mrb[0].mxu0
      %1098 = vmatprep.mubr.bf16.mxu0 0
      %1099 = vmatmul.mubr.bf16.gmra.mrb[0].mxu0 %v789
      %v1100 = vpop.f32.mrb[0].mxu0
      %v1101 = vadd.f32 %v940, %v1100
      %v1102 = vpop.f32.mrb[0].mxu0
      %v1103 = vpop.f32.mrb[0].mxu0
      %v1104 = vadd.f32 %v943, %v1103
      %v1105 = vpop.f32.mrb[0].mxu0
      %1106 = vmatprep.mubr.bf16.mxu0 0
      %1107 = vmatmul.mubr.bf16.gmra.mrb[0].mxu0 %v792
      %v1108 = vpop.f32.mrb[0].mxu0
      %v1109 = vadd.f32 %v948, %v1108
      %v1110 = vpop.f32.mrb[0].mxu0
      %v1111 = vpop.f32.mrb[0].mxu0
      %v1112 = vadd.f32 %v951, %v1111
      %v1113 = vpop.f32.mrb[0].mxu0
      %1114 = vmatprep.mubr.bf16.mxu0 0
      %1115 = vmatmul.mubr.bf16.gmra.mrb[0].mxu0 %v795
      %v1116 = vpop.f32.mrb[0].mxu0
      %v1117 = vadd.f32 %v956, %v1116
      %v1118 = vpop.f32.mrb[0].mxu0
      %v1119 = vpop.f32.mrb[0].mxu0
      %v1120 = vadd.f32 %v959, %v1119
      %v1121 = vpop.f32.mrb[0].mxu0
      %1122 = vdwg.mxu0
      %v1123 = vld [vmem:[%s266] sm:$0xff]
      %v1124 = vld [vmem:[%s266 + $0x8] sm:$0xff]
      %v1125 = vld [vmem:[%s266 + $0x10] sm:$0xff]
      %v1126 = vld [vmem:[%s266 + $0x18] sm:$0xff]
      %v1127 = vld [vmem:[%s266 + $0x20] sm:$0xff]
      %v1128 = vld [vmem:[%s266 + $0x28] sm:$0xff]
      %v1129 = vld [vmem:[%s266 + $0x30] sm:$0xff]
      %v1130 = vld [vmem:[%s266 + $0x38] sm:$0xff]
      %v1131 = vld [vmem:[%s266 + $0x40] sm:$0xff]
      %v1132 = vld [vmem:[%s266 + $0x48] sm:$0xff]
      %v1133 = vld [vmem:[%s266 + $0x50] sm:$0xff]
      %v1134 = vld [vmem:[%s266 + $0x58] sm:$0xff]
      %v1135 = vld [vmem:[%s266 + $0x60] sm:$0xff]
      %v1136 = vld [vmem:[%s266 + $0x68] sm:$0xff]
      %v1137 = vld [vmem:[%s266 + $0x70] sm:$0xff]
      %v1138 = vld [vmem:[%s266 + $0x78] sm:$0xff]
      %v1139 = vld [vmem:[%s266 + $0x80] sm:$0xff]
      %v1140 = vld [vmem:[%s266 + $0x88] sm:$0xff]
      %v1141 = vld [vmem:[%s266 + $0x90] sm:$0xff]
      %v1142 = vld [vmem:[%s266 + $0x98] sm:$0xff]
      %v1143 = vld [vmem:[%s266 + $0xa0] sm:$0xff]
      %v1144 = vld [vmem:[%s266 + $0xa8] sm:$0xff]
      %v1145 = vld [vmem:[%s266 + $0xb0] sm:$0xff]
      %v1146 = vld [vmem:[%s266 + $0xb8] sm:$0xff]
      %v1147 = vld [vmem:[%s266 + $0xc0] sm:$0xff]
      %v1148 = vld [vmem:[%s266 + $0xc8] sm:$0xff]
      %v1149 = vld [vmem:[%s266 + $0xd0] sm:$0xff]
      %v1150 = vld [vmem:[%s266 + $0xd8] sm:$0xff]
      %v1151 = vld [vmem:[%s266 + $0xe0] sm:$0xff]
      %v1152 = vld [vmem:[%s266 + $0xe8] sm:$0xff]
      %v1153 = vld [vmem:[%s266 + $0xf0] sm:$0xff]
      %v1154 = vld [vmem:[%s266 + $0xf8] sm:$0xff]
      %1187 = vrot.lane.b32.xlu0 %v1123, 32
      %v1188 = vpop.permute.xlu0 %1187
      %1189 = vrot.lane.b32.xlu0 %v1124, 32
      %v1190 = vpop.permute.xlu0 %1189
      %1191 = vrot.lane.b32.xlu0 %v1125, 32
      %v1192 = vpop.permute.xlu0 %1191
      %1193 = vrot.lane.b32.xlu0 %v1126, 32
      %v1194 = vpop.permute.xlu0 %1193
      %1195 = vrot.lane.b32.xlu0 %v1127, 32
      %v1196 = vpop.permute.xlu0 %1195
      %1197 = vrot.lane.b32.xlu0 %v1128, 32
      %v1198 = vpop.permute.xlu0 %1197
      %1199 = vrot.lane.b32.xlu0 %v1129, 32
      %v1200 = vpop.permute.xlu0 %1199
      %1201 = vrot.lane.b32.xlu0 %v1130, 32
      %v1202 = vpop.permute.xlu0 %1201
      %1203 = vrot.lane.b32.xlu0 %v1131, 32
      %v1204 = vpop.permute.xlu0 %1203
      %1205 = vrot.lane.b32.xlu0 %v1132, 32
      %v1206 = vpop.permute.xlu0 %1205
      %1207 = vrot.lane.b32.xlu0 %v1133, 32
      %v1208 = vpop.permute.xlu0 %1207
      %1209 = vrot.lane.b32.xlu0 %v1134, 32
      %v1210 = vpop.permute.xlu0 %1209
      %1211 = vrot.lane.b32.xlu0 %v1135, 32
      %v1212 = vpop.permute.xlu0 %1211
      %1213 = vrot.lane.b32.xlu0 %v1136, 32
      %v1214 = vpop.permute.xlu0 %1213
      %1215 = vrot.lane.b32.xlu0 %v1137, 32
      %v1216 = vpop.permute.xlu0 %1215
      %1217 = vrot.lane.b32.xlu0 %v1138, 32
      %v1218 = vpop.permute.xlu0 %1217
      %1219 = vrot.lane.b32.xlu0 %v1139, 32
      %v1220 = vpop.permute.xlu0 %1219
      %1221 = vrot.lane.b32.xlu0 %v1140, 32
      %v1222 = vpop.permute.xlu0 %1221
      %1223 = vrot.lane.b32.xlu0 %v1141, 32
      %v1224 = vpop.permute.xlu0 %1223
      %1225 = vrot.lane.b32.xlu0 %v1142, 32
      %v1226 = vpop.permute.xlu0 %1225
      %1227 = vrot.lane.b32.xlu0 %v1143, 32
      %v1228 = vpop.permute.xlu0 %1227
      %1229 = vrot.lane.b32.xlu0 %v1144, 32
      %v1230 = vpop.permute.xlu0 %1229
      %1231 = vrot.lane.b32.xlu0 %v1145, 32
      %v1232 = vpop.permute.xlu0 %1231
      %1233 = vrot.lane.b32.xlu0 %v1146, 32
      %v1234 = vpop.permute.xlu0 %1233
      %1235 = vrot.lane.b32.xlu0 %v1147, 32
      %v1236 = vpop.permute.xlu0 %1235
      %1237 = vrot.lane.b32.xlu0 %v1148, 32
      %v1238 = vpop.permute.xlu0 %1237
      %1239 = vrot.lane.b32.xlu0 %v1149, 32
      %v1240 = vpop.permute.xlu0 %1239
      %1241 = vrot.lane.b32.xlu0 %v1150, 32
      %v1242 = vpop.permute.xlu0 %1241
      %1243 = vrot.lane.b32.xlu0 %v1151, 32
      %v1244 = vpop.permute.xlu0 %1243
      %1245 = vrot.lane.b32.xlu0 %v1152, 32
      %v1246 = vpop.permute.xlu0 %1245
      %1247 = vrot.lane.b32.xlu0 %v1153, 32
      %v1248 = vpop.permute.xlu0 %1247
      %1249 = vrot.lane.b32.xlu0 %v1154, 32
      %v1250 = vpop.permute.xlu0 %1249
      %vm1283 = vcmask 261120
      %v1284 = vsel %vm1283, %v1123, %v1188
      %v1285 = vsel %vm1283, %v1124, %v1190
      %v1286 = vsel %vm1283, %v1125, %v1192
      %v1287 = vsel %vm1283, %v1126, %v1194
      %v1288 = vsel %vm1283, %v1127, %v1196
      %v1289 = vsel %vm1283, %v1128, %v1198
      %v1290 = vsel %vm1283, %v1129, %v1200
      %v1291 = vsel %vm1283, %v1130, %v1202
      %v1292 = vsel %vm1283, %v1131, %v1204
      %v1293 = vsel %vm1283, %v1132, %v1206
      %v1294 = vsel %vm1283, %v1133, %v1208
      %v1295 = vsel %vm1283, %v1134, %v1210
      %v1296 = vsel %vm1283, %v1135, %v1212
      %v1297 = vsel %vm1283, %v1136, %v1214
      %v1298 = vsel %vm1283, %v1137, %v1216
      %v1299 = vsel %vm1283, %v1138, %v1218
      %v1300 = vsel %vm1283, %v1139, %v1220
      %v1301 = vsel %vm1283, %v1140, %v1222
      %v1302 = vsel %vm1283, %v1141, %v1224
      %v1303 = vsel %vm1283, %v1142, %v1226
      %v1304 = vsel %vm1283, %v1143, %v1228
      %v1305 = vsel %vm1283, %v1144, %v1230
      %v1306 = vsel %vm1283, %v1145, %v1232
      %v1307 = vsel %vm1283, %v1146, %v1234
      %v1308 = vsel %vm1283, %v1147, %v1236
      %v1309 = vsel %vm1283, %v1148, %v1238
      %v1310 = vsel %vm1283, %v1149, %v1240
      %v1311 = vsel %vm1283, %v1150, %v1242
      %v1312 = vsel %vm1283, %v1151, %v1244
      %v1313 = vsel %vm1283, %v1152, %v1246
      %v1314 = vsel %vm1283, %v1153, %v1248
      %v1315 = vsel %vm1283, %v1154, %v1250
      %v1316 = vld [vmem:[%s3] sm:$0xff]
      %v1317 = vld [vmem:[%s3 + $0x8] sm:$0xff]
      %v1318 = vld [vmem:[%s3 + $0x10] sm:$0xff]
      %v1319 = vld [vmem:[%s3 + $0x18] sm:$0xff]
      %v1320 = vld [vmem:[%s3 + $0x20] sm:$0xff]
      %v1321 = vld [vmem:[%s3 + $0x28] sm:$0xff]
      %v1322 = vld [vmem:[%s3 + $0x30] sm:$0xff]
      %v1323 = vld [vmem:[%s3 + $0x38] sm:$0xff]
      %v1324 = vld [vmem:[%s3 + $0x40] sm:$0xff]
      %v1325 = vld [vmem:[%s3 + $0x48] sm:$0xff]
      %v1326 = vld [vmem:[%s3 + $0x50] sm:$0xff]
      %v1327 = vld [vmem:[%s3 + $0x58] sm:$0xff]
      %v1328 = vld [vmem:[%s3 + $0x60] sm:$0xff]
      %v1329 = vld [vmem:[%s3 + $0x68] sm:$0xff]
      %v1330 = vld [vmem:[%s3 + $0x70] sm:$0xff]
      %v1331 = vld [vmem:[%s3 + $0x78] sm:$0xff]
      %v1332 = vld [vmem:[%s3 + $0x80] sm:$0xff]
      %v1333 = vld [vmem:[%s3 + $0x88] sm:$0xff]
      %v1334 = vld [vmem:[%s3 + $0x90] sm:$0xff]
      %v1335 = vld [vmem:[%s3 + $0x98] sm:$0xff]
      %v1336 = vld [vmem:[%s3 + $0xa0] sm:$0xff]
      %v1337 = vld [vmem:[%s3 + $0xa8] sm:$0xff]
      %v1338 = vld [vmem:[%s3 + $0xb0] sm:$0xff]
      %v1339 = vld [vmem:[%s3 + $0xb8] sm:$0xff]
      %v1340 = vld [vmem:[%s3 + $0xc0] sm:$0xff]
      %v1341 = vld [vmem:[%s3 + $0xc8] sm:$0xff]
      %v1342 = vld [vmem:[%s3 + $0xd0] sm:$0xff]
      %v1343 = vld [vmem:[%s3 + $0xd8] sm:$0xff]
      %v1344 = vld [vmem:[%s3 + $0xe0] sm:$0xff]
      %v1345 = vld [vmem:[%s3 + $0xe8] sm:$0xff]
      %v1346 = vld [vmem:[%s3 + $0xf0] sm:$0xff]
      %v1347 = vld [vmem:[%s3 + $0xf8] sm:$0xff]
      %v1348 = vmul.f32 %v1316, %v1284
      %v1349 = vmul.f32 %v1317, %v1285
      %v1350 = vmul.f32 %v1318, %v1286
      %v1351 = vmul.f32 %v1319, %v1287
      %v1352 = vmul.f32 %v1320, %v1288
      %v1353 = vmul.f32 %v1321, %v1289
      %v1354 = vmul.f32 %v1322, %v1290
      %v1355 = vmul.f32 %v1323, %v1291
      %v1356 = vmul.f32 %v1324, %v1292
      %v1357 = vmul.f32 %v1325, %v1293
      %v1358 = vmul.f32 %v1326, %v1294
      %v1359 = vmul.f32 %v1327, %v1295
      %v1360 = vmul.f32 %v1328, %v1296
      %v1361 = vmul.f32 %v1329, %v1297
      %v1362 = vmul.f32 %v1330, %v1298
      %v1363 = vmul.f32 %v1331, %v1299
      %v1364 = vmul.f32 %v1332, %v1300
      %v1365 = vmul.f32 %v1333, %v1301
      %v1366 = vmul.f32 %v1334, %v1302
      %v1367 = vmul.f32 %v1335, %v1303
      %v1368 = vmul.f32 %v1336, %v1304
      %v1369 = vmul.f32 %v1337, %v1305
      %v1370 = vmul.f32 %v1338, %v1306
      %v1371 = vmul.f32 %v1339, %v1307
      %v1372 = vmul.f32 %v1340, %v1308
      %v1373 = vmul.f32 %v1341, %v1309
      %v1374 = vmul.f32 %v1342, %v1310
      %v1375 = vmul.f32 %v1343, %v1311
      %v1376 = vmul.f32 %v1344, %v1312
      %v1377 = vmul.f32 %v1345, %v1313
      %v1378 = vmul.f32 %v1346, %v1314
      %v1379 = vmul.f32 %v1347, %v1315
      %v1380 = vadd.f32 %v997, %v1348
      %v1381 = vadd.f32 %v1000, %v1349
      %v1382 = vadd.f32 %v1005, %v1350
      %v1383 = vadd.f32 %v1008, %v1351
      %v1384 = vadd.f32 %v1013, %v1352
      %v1385 = vadd.f32 %v1016, %v1353
      %v1386 = vadd.f32 %v1021, %v1354
      %v1387 = vadd.f32 %v1024, %v1355
      %v1388 = vadd.f32 %v1029, %v1356
      %v1389 = vadd.f32 %v1032, %v1357
      %v1390 = vadd.f32 %v1037, %v1358
      %v1391 = vadd.f32 %v1040, %v1359
      %v1392 = vadd.f32 %v1045, %v1360
      %v1393 = vadd.f32 %v1048, %v1361
      %v1394 = vadd.f32 %v1053, %v1362
      %v1395 = vadd.f32 %v1056, %v1363
      %v1396 = vadd.f32 %v1061, %v1364
      %v1397 = vadd.f32 %v1064, %v1365
      %v1398 = vadd.f32 %v1069, %v1366
      %v1399 = vadd.f32 %v1072, %v1367
      %v1400 = vadd.f32 %v1077, %v1368
      %v1401 = vadd.f32 %v1080, %v1369
      %v1402 = vadd.f32 %v1085, %v1370
      %v1403 = vadd.f32 %v1088, %v1371
      %v1404 = vadd.f32 %v1093, %v1372
      %v1405 = vadd.f32 %v1096, %v1373
      %v1406 = vadd.f32 %v1101, %v1374
      %v1407 = vadd.f32 %v1104, %v1375
      %v1408 = vadd.f32 %v1109, %v1376
      %v1409 = vadd.f32 %v1112, %v1377
      %v1410 = vadd.f32 %v1117, %v1378
      %v1411 = vadd.f32 %v1120, %v1379
      %v1412 = vxor.u32 %v1380, 2147483648
      %v1413 = vxor.u32 %v1381, 2147483648
      %v1414 = vxor.u32 %v1382, 2147483648
      %v1415 = vxor.u32 %v1383, 2147483648
      %v1416 = vxor.u32 %v1384, 2147483648
      %v1417 = vxor.u32 %v1385, 2147483648
      %v1418 = vxor.u32 %v1386, 2147483648
      %v1419 = vxor.u32 %v1387, 2147483648
      %v1420 = vxor.u32 %v1388, 2147483648
      %v1421 = vxor.u32 %v1389, 2147483648
      %v1422 = vxor.u32 %v1390, 2147483648
      %v1423 = vxor.u32 %v1391, 2147483648
      %v1424 = vxor.u32 %v1392, 2147483648
      %v1425 = vxor.u32 %v1393, 2147483648
      %v1426 = vxor.u32 %v1394, 2147483648
      %v1427 = vxor.u32 %v1395, 2147483648
      %v1428 = vxor.u32 %v1396, 2147483648
      %v1429 = vxor.u32 %v1397, 2147483648
      %v1430 = vxor.u32 %v1398, 2147483648
      %v1431 = vxor.u32 %v1399, 2147483648
      %v1432 = vxor.u32 %v1400, 2147483648
      %v1433 = vxor.u32 %v1401, 2147483648
      %v1434 = vxor.u32 %v1402, 2147483648
      %v1435 = vxor.u32 %v1403, 2147483648
      %v1436 = vxor.u32 %v1404, 2147483648
      %v1437 = vxor.u32 %v1405, 2147483648
      %v1438 = vxor.u32 %v1406, 2147483648
      %v1439 = vxor.u32 %v1407, 2147483648
      %v1440 = vxor.u32 %v1408, 2147483648
      %v1441 = vxor.u32 %v1409, 2147483648
      %v1442 = vxor.u32 %v1410, 2147483648
      %v1443 = vxor.u32 %v1411, 2147483648
      %v1444 = vmul.f32 %v1412, 1.442695
      %v1445 = vpow.pop %v1444
      %v1446 = vmul.f32 %v1413, 1.442695
      %v1447 = vpow.pop %v1446
      %v1448 = vmul.f32 %v1414, 1.442695
      %v1449 = vpow.pop %v1448
      %v1450 = vmul.f32 %v1415, 1.442695
      %v1451 = vpow.pop %v1450
      %v1452 = vmul.f32 %v1416, 1.442695
      %v1453 = vpow.pop %v1452
      %v1454 = vmul.f32 %v1417, 1.442695
      %v1455 = vpow.pop %v1454
      %v1456 = vmul.f32 %v1418, 1.442695
      %v1457 = vpow.pop %v1456
      %v1458 = vmul.f32 %v1419, 1.442695
      %v1459 = vpow.pop %v1458
      %v1460 = vmul.f32 %v1420, 1.442695
      %v1461 = vpow.pop %v1460
      %v1462 = vmul.f32 %v1421, 1.442695
      %v1463 = vpow.pop %v1462
      %v1464 = vmul.f32 %v1422, 1.442695
      %v1465 = vpow.pop %v1464
      %v1466 = vmul.f32 %v1423, 1.442695
      %v1467 = vpow.pop %v1466
      %v1468 = vmul.f32 %v1424, 1.442695
      %v1469 = vpow.pop %v1468
      %v1470 = vmul.f32 %v1425, 1.442695
      %v1471 = vpow.pop %v1470
      %v1472 = vmul.f32 %v1426, 1.442695
      %v1473 = vpow.pop %v1472
      %v1474 = vmul.f32 %v1427, 1.442695
      %v1475 = vpow.pop %v1474
      %v1476 = vmul.f32 %v1428, 1.442695
      %v1477 = vpow.pop %v1476
      %v1478 = vmul.f32 %v1429, 1.442695
      %v1479 = vpow.pop %v1478
      %v1480 = vmul.f32 %v1430, 1.442695
      %v1481 = vpow.pop %v1480
      %v1482 = vmul.f32 %v1431, 1.442695
      %v1483 = vpow.pop %v1482
      %v1484 = vmul.f32 %v1432, 1.442695
      %v1485 = vpow.pop %v1484
      %v1486 = vmul.f32 %v1433, 1.442695
      %v1487 = vpow.pop %v1486
      %v1488 = vmul.f32 %v1434, 1.442695
      %v1489 = vpow.pop %v1488
      %v1490 = vmul.f32 %v1435, 1.442695
      %v1491 = vpow.pop %v1490
      %v1492 = vmul.f32 %v1436, 1.442695
      %v1493 = vpow.pop %v1492
      %v1494 = vmul.f32 %v1437, 1.442695
      %v1495 = vpow.pop %v1494
      %v1496 = vmul.f32 %v1438, 1.442695
      %v1497 = vpow.pop %v1496
      %v1498 = vmul.f32 %v1439, 1.442695
      %v1499 = vpow.pop %v1498
      %v1500 = vmul.f32 %v1440, 1.442695
      %v1501 = vpow.pop %v1500
      %v1502 = vmul.f32 %v1441, 1.442695
      %v1503 = vpow.pop %v1502
      %v1504 = vmul.f32 %v1442, 1.442695
      %v1505 = vpow.pop %v1504
      %v1506 = vmul.f32 %v1443, 1.442695
      %v1507 = vpow.pop %v1506
      %v1508 = vadd.f32 %v1445, 1.0
      %v1509 = vadd.f32 %v1447, 1.0
      %v1510 = vadd.f32 %v1449, 1.0
      %v1511 = vadd.f32 %v1451, 1.0
      %v1512 = vadd.f32 %v1453, 1.0
      %v1513 = vadd.f32 %v1455, 1.0
      %v1514 = vadd.f32 %v1457, 1.0
      %v1515 = vadd.f32 %v1459, 1.0
      %v1516 = vadd.f32 %v1461, 1.0
      %v1517 = vadd.f32 %v1463, 1.0
      %v1518 = vadd.f32 %v1465, 1.0
      %v1519 = vadd.f32 %v1467, 1.0
      %v1520 = vadd.f32 %v1469, 1.0
      %v1521 = vadd.f32 %v1471, 1.0
      %v1522 = vadd.f32 %v1473, 1.0
      %v1523 = vadd.f32 %v1475, 1.0
      %v1524 = vadd.f32 %v1477, 1.0
      %v1525 = vadd.f32 %v1479, 1.0
      %v1526 = vadd.f32 %v1481, 1.0
      %v1527 = vadd.f32 %v1483, 1.0
      %v1528 = vadd.f32 %v1485, 1.0
      %v1529 = vadd.f32 %v1487, 1.0
      %v1530 = vadd.f32 %v1489, 1.0
      %v1531 = vadd.f32 %v1491, 1.0
      %v1532 = vadd.f32 %v1493, 1.0
      %v1533 = vadd.f32 %v1495, 1.0
      %v1534 = vadd.f32 %v1497, 1.0
      %v1535 = vadd.f32 %v1499, 1.0
      %v1536 = vadd.f32 %v1501, 1.0
      %v1537 = vadd.f32 %v1503, 1.0
      %v1538 = vadd.f32 %v1505, 1.0
      %v1539 = vadd.f32 %v1507, 1.0
      %v1540 = vrcp.pop %v1508
      %v1541 = vmul.f32 1.0, %v1540
      %v1542 = vrcp.pop %v1509
      %v1543 = vmul.f32 1.0, %v1542
      %v1544 = vrcp.pop %v1510
      %v1545 = vmul.f32 1.0, %v1544
      %v1546 = vrcp.pop %v1511
      %v1547 = vmul.f32 1.0, %v1546
      %v1548 = vrcp.pop %v1512
      %v1549 = vmul.f32 1.0, %v1548
      %v1550 = vrcp.pop %v1513
      %v1551 = vmul.f32 1.0, %v1550
      %v1552 = vrcp.pop %v1514
      %v1553 = vmul.f32 1.0, %v1552
      %v1554 = vrcp.pop %v1515
      %v1555 = vmul.f32 1.0, %v1554
      %v1556 = vrcp.pop %v1516
      %v1557 = vmul.f32 1.0, %v1556
      %v1558 = vrcp.pop %v1517
      %v1559 = vmul.f32 1.0, %v1558
      %v1560 = vrcp.pop %v1518
      %v1561 = vmul.f32 1.0, %v1560
      %v1562 = vrcp.pop %v1519
      %v1563 = vmul.f32 1.0, %v1562
      %v1564 = vrcp.pop %v1520
      %v1565 = vmul.f32 1.0, %v1564
      %v1566 = vrcp.pop %v1521
      %v1567 = vmul.f32 1.0, %v1566
      %v1568 = vrcp.pop %v1522
      %v1569 = vmul.f32 1.0, %v1568
      %v1570 = vrcp.pop %v1523
      %v1571 = vmul.f32 1.0, %v1570
      %v1572 = vrcp.pop %v1524
      %v1573 = vmul.f32 1.0, %v1572
      %v1574 = vrcp.pop %v1525
      %v1575 = vmul.f32 1.0, %v1574
      %v1576 = vrcp.pop %v1526
      %v1577 = vmul.f32 1.0, %v1576
      %v1578 = vrcp.pop %v1527
      %v1579 = vmul.f32 1.0, %v1578
      %v1580 = vrcp.pop %v1528
      %v1581 = vmul.f32 1.0, %v1580
      %v1582 = vrcp.pop %v1529
      %v1583 = vmul.f32 1.0, %v1582
      %v1584 = vrcp.pop %v1530
      %v1585 = vmul.f32 1.0, %v1584
      %v1586 = vrcp.pop %v1531
      %v1587 = vmul.f32 1.0, %v1586
      %v1588 = vrcp.pop %v1532
      %v1589 = vmul.f32 1.0, %v1588
      %v1590 = vrcp.pop %v1533
      %v1591 = vmul.f32 1.0, %v1590
      %v1592 = vrcp.pop %v1534
      %v1593 = vmul.f32 1.0, %v1592
      %v1594 = vrcp.pop %v1535
      %v1595 = vmul.f32 1.0, %v1594
      %v1596 = vrcp.pop %v1536
      %v1597 = vmul.f32 1.0, %v1596
      %v1598 = vrcp.pop %v1537
      %v1599 = vmul.f32 1.0, %v1598
      %v1600 = vrcp.pop %v1538
      %v1601 = vmul.f32 1.0, %v1600
      %v1602 = vrcp.pop %v1539
      %v1603 = vmul.f32 1.0, %v1602
      %v1604 = vmul.f32 %v1541, %v1188
      %v1605 = vmul.f32 %v1543, %v1190
      %v1606 = vmul.f32 %v1545, %v1192
      %v1607 = vmul.f32 %v1547, %v1194
      %v1608 = vmul.f32 %v1549, %v1196
      %v1609 = vmul.f32 %v1551, %v1198
      %v1610 = vmul.f32 %v1553, %v1200
      %v1611 = vmul.f32 %v1555, %v1202
      %v1612 = vmul.f32 %v1557, %v1204
      %v1613 = vmul.f32 %v1559, %v1206
      %v1614 = vmul.f32 %v1561, %v1208
      %v1615 = vmul.f32 %v1563, %v1210
      %v1616 = vmul.f32 %v1565, %v1212
      %v1617 = vmul.f32 %v1567, %v1214
      %v1618 = vmul.f32 %v1569, %v1216
      %v1619 = vmul.f32 %v1571, %v1218
      %v1620 = vmul.f32 %v1573, %v1220
      %v1621 = vmul.f32 %v1575, %v1222
      %v1622 = vmul.f32 %v1577, %v1224
      %v1623 = vmul.f32 %v1579, %v1226
      %v1624 = vmul.f32 %v1581, %v1228
      %v1625 = vmul.f32 %v1583, %v1230
      %v1626 = vmul.f32 %v1585, %v1232
      %v1627 = vmul.f32 %v1587, %v1234
      %v1628 = vmul.f32 %v1589, %v1236
      %v1629 = vmul.f32 %v1591, %v1238
      %v1630 = vmul.f32 %v1593, %v1240
      %v1631 = vmul.f32 %v1595, %v1242
      %v1632 = vmul.f32 %v1597, %v1244
      %v1633 = vmul.f32 %v1599, %v1246
      %v1634 = vmul.f32 %v1601, %v1248
      %v1635 = vmul.f32 %v1603, %v1250
      %v1636 = vtanh.pop %v997
      %v1637 = vtanh.pop %v1000
      %v1638 = vtanh.pop %v1005
      %v1639 = vtanh.pop %v1008
      %v1640 = vtanh.pop %v1013
      %v1641 = vtanh.pop %v1016
      %v1642 = vtanh.pop %v1021
      %v1643 = vtanh.pop %v1024
      %v1644 = vtanh.pop %v1029
      %v1645 = vtanh.pop %v1032
      %v1646 = vtanh.pop %v1037
      %v1647 = vtanh.pop %v1040
      %v1648 = vtanh.pop %v1045
      %v1649 = vtanh.pop %v1048
      %v1650 = vtanh.pop %v1053
      %v1651 = vtanh.pop %v1056
      %v1652 = vtanh.pop %v1061
      %v1653 = vtanh.pop %v1064
      %v1654 = vtanh.pop %v1069
      %v1655 = vtanh.pop %v1072
      %v1656 = vtanh.pop %v1077
      %v1657 = vtanh.pop %v1080
      %v1658 = vtanh.pop %v1085
      %v1659 = vtanh.pop %v1088
      %v1660 = vtanh.pop %v1093
      %v1661 = vtanh.pop %v1096
      %v1662 = vtanh.pop %v1101
      %v1663 = vtanh.pop %v1104
      %v1664 = vtanh.pop %v1109
      %v1665 = vtanh.pop %v1112
      %v1666 = vtanh.pop %v1117
      %v1667 = vtanh.pop %v1120
      %1700 = vrot.lane.b32.xlu0 %v1636, 64
      %v1701 = vpop.permute.xlu0 %1700
      %1702 = vrot.lane.b32.xlu0 %v1637, 64
      %v1703 = vpop.permute.xlu0 %1702
      %1704 = vrot.lane.b32.xlu0 %v1638, 64
      %v1705 = vpop.permute.xlu0 %1704
      %1706 = vrot.lane.b32.xlu0 %v1639, 64
      %v1707 = vpop.permute.xlu0 %1706
      %1708 = vrot.lane.b32.xlu0 %v1640, 64
      %v1709 = vpop.permute.xlu0 %1708
      %1710 = vrot.lane.b32.xlu0 %v1641, 64
      %v1711 = vpop.permute.xlu0 %1710
      %1712 = vrot.lane.b32.xlu0 %v1642, 64
      %v1713 = vpop.permute.xlu0 %1712
      %1714 = vrot.lane.b32.xlu0 %v1643, 64
      %v1715 = vpop.permute.xlu0 %1714
      %1716 = vrot.lane.b32.xlu0 %v1644, 64
      %v1717 = vpop.permute.xlu0 %1716
      %1718 = vrot.lane.b32.xlu0 %v1645, 64
      %v1719 = vpop.permute.xlu0 %1718
      %1720 = vrot.lane.b32.xlu0 %v1646, 64
      %v1721 = vpop.permute.xlu0 %1720
      %1722 = vrot.lane.b32.xlu0 %v1647, 64
      %v1723 = vpop.permute.xlu0 %1722
      %1724 = vrot.lane.b32.xlu0 %v1648, 64
      %v1725 = vpop.permute.xlu0 %1724
      %1726 = vrot.lane.b32.xlu0 %v1649, 64
      %v1727 = vpop.permute.xlu0 %1726
      %1728 = vrot.lane.b32.xlu0 %v1650, 64
      %v1729 = vpop.permute.xlu0 %1728
      %1730 = vrot.lane.b32.xlu0 %v1651, 64
      %v1731 = vpop.permute.xlu0 %1730
      %1732 = vrot.lane.b32.xlu0 %v1652, 64
      %v1733 = vpop.permute.xlu0 %1732
      %1734 = vrot.lane.b32.xlu0 %v1653, 64
      %v1735 = vpop.permute.xlu0 %1734
      %1736 = vrot.lane.b32.xlu0 %v1654, 64
      %v1737 = vpop.permute.xlu0 %1736
      %1738 = vrot.lane.b32.xlu0 %v1655, 64
      %v1739 = vpop.permute.xlu0 %1738
      %1740 = vrot.lane.b32.xlu0 %v1656, 64
      %v1741 = vpop.permute.xlu0 %1740
      %1742 = vrot.lane.b32.xlu0 %v1657, 64
      %v1743 = vpop.permute.xlu0 %1742
      %1744 = vrot.lane.b32.xlu0 %v1658, 64
      %v1745 = vpop.permute.xlu0 %1744
      %1746 = vrot.lane.b32.xlu0 %v1659, 64
      %v1747 = vpop.permute.xlu0 %1746
      %1748 = vrot.lane.b32.xlu0 %v1660, 64
      %v1749 = vpop.permute.xlu0 %1748
      %1750 = vrot.lane.b32.xlu0 %v1661, 64
      %v1751 = vpop.permute.xlu0 %1750
      %1752 = vrot.lane.b32.xlu0 %v1662, 64
      %v1753 = vpop.permute.xlu0 %1752
      %1754 = vrot.lane.b32.xlu0 %v1663, 64
      %v1755 = vpop.permute.xlu0 %1754
      %1756 = vrot.lane.b32.xlu0 %v1664, 64
      %v1757 = vpop.permute.xlu0 %1756
      %1758 = vrot.lane.b32.xlu0 %v1665, 64
      %v1759 = vpop.permute.xlu0 %1758
      %1760 = vrot.lane.b32.xlu0 %v1666, 64
      %v1761 = vpop.permute.xlu0 %1760
      %1762 = vrot.lane.b32.xlu0 %v1667, 64
      %v1763 = vpop.permute.xlu0 %1762
      %v1796 = vmul.f32 %v1541, %v1701
      %v1797 = vmul.f32 %v1543, %v1703
      %v1798 = vmul.f32 %v1545, %v1705
      %v1799 = vmul.f32 %v1547, %v1707
      %v1800 = vmul.f32 %v1549, %v1709
      %v1801 = vmul.f32 %v1551, %v1711
      %v1802 = vmul.f32 %v1553, %v1713
      %v1803 = vmul.f32 %v1555, %v1715
      %v1804 = vmul.f32 %v1557, %v1717
      %v1805 = vmul.f32 %v1559, %v1719
      %v1806 = vmul.f32 %v1561, %v1721
      %v1807 = vmul.f32 %v1563, %v1723
      %v1808 = vmul.f32 %v1565, %v1725
      %v1809 = vmul.f32 %v1567, %v1727
      %v1810 = vmul.f32 %v1569, %v1729
      %v1811 = vmul.f32 %v1571, %v1731
      %v1812 = vmul.f32 %v1573, %v1733
      %v1813 = vmul.f32 %v1575, %v1735
      %v1814 = vmul.f32 %v1577, %v1737
      %v1815 = vmul.f32 %v1579, %v1739
      %v1816 = vmul.f32 %v1581, %v1741
      %v1817 = vmul.f32 %v1583, %v1743
      %v1818 = vmul.f32 %v1585, %v1745
      %v1819 = vmul.f32 %v1587, %v1747
      %v1820 = vmul.f32 %v1589, %v1749
      %v1821 = vmul.f32 %v1591, %v1751
      %v1822 = vmul.f32 %v1593, %v1753
      %v1823 = vmul.f32 %v1595, %v1755
      %v1824 = vmul.f32 %v1597, %v1757
      %v1825 = vmul.f32 %v1599, %v1759
      %v1826 = vmul.f32 %v1601, %v1761
      %v1827 = vmul.f32 %v1603, %v1763
      %1860 = vrot.lane.b32.xlu0 %v1796, 32
      %v1861 = vpop.permute.xlu0 %1860
      %1862 = vrot.lane.b32.xlu0 %v1797, 32
      %v1863 = vpop.permute.xlu0 %1862
      %1864 = vrot.lane.b32.xlu0 %v1798, 32
      %v1865 = vpop.permute.xlu0 %1864
      %1866 = vrot.lane.b32.xlu0 %v1799, 32
      %v1867 = vpop.permute.xlu0 %1866
      %1868 = vrot.lane.b32.xlu0 %v1800, 32
      %v1869 = vpop.permute.xlu0 %1868
      %1870 = vrot.lane.b32.xlu0 %v1801, 32
      %v1871 = vpop.permute.xlu0 %1870
      %1872 = vrot.lane.b32.xlu0 %v1802, 32
      %v1873 = vpop.permute.xlu0 %1872
      %1874 = vrot.lane.b32.xlu0 %v1803, 32
      %v1875 = vpop.permute.xlu0 %1874
      %1876 = vrot.lane.b32.xlu0 %v1804, 32
      %v1877 = vpop.permute.xlu0 %1876
      %1878 = vrot.lane.b32.xlu0 %v1805, 32
      %v1879 = vpop.permute.xlu0 %1878
      %1880 = vrot.lane.b32.xlu0 %v1806, 32
      %v1881 = vpop.permute.xlu0 %1880
      %1882 = vrot.lane.b32.xlu0 %v1807, 32
      %v1883 = vpop.permute.xlu0 %1882
      %1884 = vrot.lane.b32.xlu0 %v1808, 32
      %v1885 = vpop.permute.xlu0 %1884
      %1886 = vrot.lane.b32.xlu0 %v1809, 32
      %v1887 = vpop.permute.xlu0 %1886
      %1888 = vrot.lane.b32.xlu0 %v1810, 32
      %v1889 = vpop.permute.xlu0 %1888
      %1890 = vrot.lane.b32.xlu0 %v1811, 32
      %v1891 = vpop.permute.xlu0 %1890
      %1892 = vrot.lane.b32.xlu0 %v1812, 32
      %v1893 = vpop.permute.xlu0 %1892
      %1894 = vrot.lane.b32.xlu0 %v1813, 32
      %v1895 = vpop.permute.xlu0 %1894
      %1896 = vrot.lane.b32.xlu0 %v1814, 32
      %v1897 = vpop.permute.xlu0 %1896
      %1898 = vrot.lane.b32.xlu0 %v1815, 32
      %v1899 = vpop.permute.xlu0 %1898
      %1900 = vrot.lane.b32.xlu0 %v1816, 32
      %v1901 = vpop.permute.xlu0 %1900
      %1902 = vrot.lane.b32.xlu0 %v1817, 32
      %v1903 = vpop.permute.xlu0 %1902
      %1904 = vrot.lane.b32.xlu0 %v1818, 32
      %v1905 = vpop.permute.xlu0 %1904
      %1906 = vrot.lane.b32.xlu0 %v1819, 32
      %v1907 = vpop.permute.xlu0 %1906
      %1908 = vrot.lane.b32.xlu0 %v1820, 32
      %v1909 = vpop.permute.xlu0 %1908
      %1910 = vrot.lane.b32.xlu0 %v1821, 32
      %v1911 = vpop.permute.xlu0 %1910
      %1912 = vrot.lane.b32.xlu0 %v1822, 32
      %v1913 = vpop.permute.xlu0 %1912
      %1914 = vrot.lane.b32.xlu0 %v1823, 32
      %v1915 = vpop.permute.xlu0 %1914
      %1916 = vrot.lane.b32.xlu0 %v1824, 32
      %v1917 = vpop.permute.xlu0 %1916
      %1918 = vrot.lane.b32.xlu0 %v1825, 32
      %v1919 = vpop.permute.xlu0 %1918
      %1920 = vrot.lane.b32.xlu0 %v1826, 32
      %v1921 = vpop.permute.xlu0 %1920
      %1922 = vrot.lane.b32.xlu0 %v1827, 32
      %v1923 = vpop.permute.xlu0 %1922
      %v1956 = vadd.f32 %v1604, %v1861
      %v1957 = vadd.f32 %v1605, %v1863
      %v1958 = vadd.f32 %v1606, %v1865
      %v1959 = vadd.f32 %v1607, %v1867
      %v1960 = vadd.f32 %v1608, %v1869
      %v1961 = vadd.f32 %v1609, %v1871
      %v1962 = vadd.f32 %v1610, %v1873
      %v1963 = vadd.f32 %v1611, %v1875
      %v1964 = vadd.f32 %v1612, %v1877
      %v1965 = vadd.f32 %v1613, %v1879
      %v1966 = vadd.f32 %v1614, %v1881
      %v1967 = vadd.f32 %v1615, %v1883
      %v1968 = vadd.f32 %v1616, %v1885
      %v1969 = vadd.f32 %v1617, %v1887
      %v1970 = vadd.f32 %v1618, %v1889
      %v1971 = vadd.f32 %v1619, %v1891
      %v1972 = vadd.f32 %v1620, %v1893
      %v1973 = vadd.f32 %v1621, %v1895
      %v1974 = vadd.f32 %v1622, %v1897
      %v1975 = vadd.f32 %v1623, %v1899
      %v1976 = vadd.f32 %v1624, %v1901
      %v1977 = vadd.f32 %v1625, %v1903
      %v1978 = vadd.f32 %v1626, %v1905
      %v1979 = vadd.f32 %v1627, %v1907
      %v1980 = vadd.f32 %v1628, %v1909
      %v1981 = vadd.f32 %v1629, %v1911
      %v1982 = vadd.f32 %v1630, %v1913
      %v1983 = vadd.f32 %v1631, %v1915
      %v1984 = vadd.f32 %v1632, %v1917
      %v1985 = vadd.f32 %v1633, %v1919
      %v1986 = vadd.f32 %v1634, %v1921
      %v1987 = vadd.f32 %v1635, %v1923
      %v1988 = vld [vmem:[%s4] sm:$0xff]
      %v1989 = vld [vmem:[%s4 + $0x8] sm:$0xff]
      %v1990 = vld [vmem:[%s4 + $0x10] sm:$0xff]
      %v1991 = vld [vmem:[%s4 + $0x18] sm:$0xff]
      %v1992 = vld [vmem:[%s4 + $0x20] sm:$0xff]
      %v1993 = vld [vmem:[%s4 + $0x28] sm:$0xff]
      %v1994 = vld [vmem:[%s4 + $0x30] sm:$0xff]
      %v1995 = vld [vmem:[%s4 + $0x38] sm:$0xff]
      %v1996 = vld [vmem:[%s4 + $0x40] sm:$0xff]
      %v1997 = vld [vmem:[%s4 + $0x48] sm:$0xff]
      %v1998 = vld [vmem:[%s4 + $0x50] sm:$0xff]
      %v1999 = vld [vmem:[%s4 + $0x58] sm:$0xff]
      %v2000 = vld [vmem:[%s4 + $0x60] sm:$0xff]
      %v2001 = vld [vmem:[%s4 + $0x68] sm:$0xff]
      %v2002 = vld [vmem:[%s4 + $0x70] sm:$0xff]
      %v2003 = vld [vmem:[%s4 + $0x78] sm:$0xff]
      %v2004 = vld [vmem:[%s4 + $0x80] sm:$0xff]
      %v2005 = vld [vmem:[%s4 + $0x88] sm:$0xff]
      %v2006 = vld [vmem:[%s4 + $0x90] sm:$0xff]
      %v2007 = vld [vmem:[%s4 + $0x98] sm:$0xff]
      %v2008 = vld [vmem:[%s4 + $0xa0] sm:$0xff]
      %v2009 = vld [vmem:[%s4 + $0xa8] sm:$0xff]
      %v2010 = vld [vmem:[%s4 + $0xb0] sm:$0xff]
      %v2011 = vld [vmem:[%s4 + $0xb8] sm:$0xff]
      %v2012 = vld [vmem:[%s4 + $0xc0] sm:$0xff]
      %v2013 = vld [vmem:[%s4 + $0xc8] sm:$0xff]
      %v2014 = vld [vmem:[%s4 + $0xd0] sm:$0xff]
      %v2015 = vld [vmem:[%s4 + $0xd8] sm:$0xff]
      %v2016 = vld [vmem:[%s4 + $0xe0] sm:$0xff]
      %v2017 = vld [vmem:[%s4 + $0xe8] sm:$0xff]
      %v2018 = vld [vmem:[%s4 + $0xf0] sm:$0xff]
      %v2019 = vld [vmem:[%s4 + $0xf8] sm:$0xff]
      %2052 = vrot.lane.b32.xlu0 %v1956, 96
      %v2053 = vpop.permute.xlu0 %2052
      %2054 = vrot.lane.b32.xlu0 %v1957, 96
      %v2055 = vpop.permute.xlu0 %2054
      %2056 = vrot.lane.b32.xlu0 %v1958, 96
      %v2057 = vpop.permute.xlu0 %2056
      %2058 = vrot.lane.b32.xlu0 %v1959, 96
      %v2059 = vpop.permute.xlu0 %2058
      %2060 = vrot.lane.b32.xlu0 %v1960, 96
      %v2061 = vpop.permute.xlu0 %2060
      %2062 = vrot.lane.b32.xlu0 %v1961, 96
      %v2063 = vpop.permute.xlu0 %2062
      %2064 = vrot.lane.b32.xlu0 %v1962, 96
      %v2065 = vpop.permute.xlu0 %2064
      %2066 = vrot.lane.b32.xlu0 %v1963, 96
      %v2067 = vpop.permute.xlu0 %2066
      %2068 = vrot.lane.b32.xlu0 %v1964, 96
      %v2069 = vpop.permute.xlu0 %2068
      %2070 = vrot.lane.b32.xlu0 %v1965, 96
      %v2071 = vpop.permute.xlu0 %2070
      %2072 = vrot.lane.b32.xlu0 %v1966, 96
      %v2073 = vpop.permute.xlu0 %2072
      %2074 = vrot.lane.b32.xlu0 %v1967, 96
      %v2075 = vpop.permute.xlu0 %2074
      %2076 = vrot.lane.b32.xlu0 %v1968, 96
      %v2077 = vpop.permute.xlu0 %2076
      %2078 = vrot.lane.b32.xlu0 %v1969, 96
      %v2079 = vpop.permute.xlu0 %2078
      %2080 = vrot.lane.b32.xlu0 %v1970, 96
      %v2081 = vpop.permute.xlu0 %2080
      %2082 = vrot.lane.b32.xlu0 %v1971, 96
      %v2083 = vpop.permute.xlu0 %2082
      %2084 = vrot.lane.b32.xlu0 %v1972, 96
      %v2085 = vpop.permute.xlu0 %2084
      %2086 = vrot.lane.b32.xlu0 %v1973, 96
      %v2087 = vpop.permute.xlu0 %2086
      %2088 = vrot.lane.b32.xlu0 %v1974, 96
      %v2089 = vpop.permute.xlu0 %2088
      %2090 = vrot.lane.b32.xlu0 %v1975, 96
      %v2091 = vpop.permute.xlu0 %2090
      %2092 = vrot.lane.b32.xlu0 %v1976, 96
      %v2093 = vpop.permute.xlu0 %2092
      %2094 = vrot.lane.b32.xlu0 %v1977, 96
      %v2095 = vpop.permute.xlu0 %2094
      %2096 = vrot.lane.b32.xlu0 %v1978, 96
      %v2097 = vpop.permute.xlu0 %2096
      %2098 = vrot.lane.b32.xlu0 %v1979, 96
      %v2099 = vpop.permute.xlu0 %2098
      %2100 = vrot.lane.b32.xlu0 %v1980, 96
      %v2101 = vpop.permute.xlu0 %2100
      %2102 = vrot.lane.b32.xlu0 %v1981, 96
      %v2103 = vpop.permute.xlu0 %2102
      %2104 = vrot.lane.b32.xlu0 %v1982, 96
      %v2105 = vpop.permute.xlu0 %2104
      %2106 = vrot.lane.b32.xlu0 %v1983, 96
      %v2107 = vpop.permute.xlu0 %2106
      %2108 = vrot.lane.b32.xlu0 %v1984, 96
      %v2109 = vpop.permute.xlu0 %2108
      %2110 = vrot.lane.b32.xlu0 %v1985, 96
      %v2111 = vpop.permute.xlu0 %2110
      %2112 = vrot.lane.b32.xlu0 %v1986, 96
      %v2113 = vpop.permute.xlu0 %2112
      %2114 = vrot.lane.b32.xlu0 %v1987, 96
      %v2115 = vpop.permute.xlu0 %2114
      %v2148 = vmul.f32 %v1988, %v2053
      %v2149 = vmul.f32 %v1989, %v2055
      %v2150 = vmul.f32 %v1990, %v2057
      %v2151 = vmul.f32 %v1991, %v2059
      %v2152 = vmul.f32 %v1992, %v2061
      %v2153 = vmul.f32 %v1993, %v2063
      %v2154 = vmul.f32 %v1994, %v2065
      %v2155 = vmul.f32 %v1995, %v2067
      %v2156 = vmul.f32 %v1996, %v2069
      %v2157 = vmul.f32 %v1997, %v2071
      %v2158 = vmul.f32 %v1998, %v2073
      %v2159 = vmul.f32 %v1999, %v2075
      %v2160 = vmul.f32 %v2000, %v2077
      %v2161 = vmul.f32 %v2001, %v2079
      %v2162 = vmul.f32 %v2002, %v2081
      %v2163 = vmul.f32 %v2003, %v2083
      %v2164 = vmul.f32 %v2004, %v2085
      %v2165 = vmul.f32 %v2005, %v2087
      %v2166 = vmul.f32 %v2006, %v2089
      %v2167 = vmul.f32 %v2007, %v2091
      %v2168 = vmul.f32 %v2008, %v2093
      %v2169 = vmul.f32 %v2009, %v2095
      %v2170 = vmul.f32 %v2010, %v2097
      %v2171 = vmul.f32 %v2011, %v2099
      %v2172 = vmul.f32 %v2012, %v2101
      %v2173 = vmul.f32 %v2013, %v2103
      %v2174 = vmul.f32 %v2014, %v2105
      %v2175 = vmul.f32 %v2015, %v2107
      %v2176 = vmul.f32 %v2016, %v2109
      %v2177 = vmul.f32 %v2017, %v2111
      %v2178 = vmul.f32 %v2018, %v2113
      %v2179 = vmul.f32 %v2019, %v2115
      %2212 = vrot.lane.b32.xlu0 %v2148, 96
      %v2213 = vpop.permute.xlu0 %2212
      %2214 = vrot.lane.b32.xlu0 %v2149, 96
      %v2215 = vpop.permute.xlu0 %2214
      %2216 = vrot.lane.b32.xlu0 %v2150, 96
      %v2217 = vpop.permute.xlu0 %2216
      %2218 = vrot.lane.b32.xlu0 %v2151, 96
      %v2219 = vpop.permute.xlu0 %2218
      %2220 = vrot.lane.b32.xlu0 %v2152, 96
      %v2221 = vpop.permute.xlu0 %2220
      %2222 = vrot.lane.b32.xlu0 %v2153, 96
      %v2223 = vpop.permute.xlu0 %2222
      %2224 = vrot.lane.b32.xlu0 %v2154, 96
      %v2225 = vpop.permute.xlu0 %2224
      %2226 = vrot.lane.b32.xlu0 %v2155, 96
      %v2227 = vpop.permute.xlu0 %2226
      %2228 = vrot.lane.b32.xlu0 %v2156, 96
      %v2229 = vpop.permute.xlu0 %2228
      %2230 = vrot.lane.b32.xlu0 %v2157, 96
      %v2231 = vpop.permute.xlu0 %2230
      %2232 = vrot.lane.b32.xlu0 %v2158, 96
      %v2233 = vpop.permute.xlu0 %2232
      %2234 = vrot.lane.b32.xlu0 %v2159, 96
      %v2235 = vpop.permute.xlu0 %2234
      %2236 = vrot.lane.b32.xlu0 %v2160, 96
      %v2237 = vpop.permute.xlu0 %2236
      %2238 = vrot.lane.b32.xlu0 %v2161, 96
      %v2239 = vpop.permute.xlu0 %2238
      %2240 = vrot.lane.b32.xlu0 %v2162, 96
      %v2241 = vpop.permute.xlu0 %2240
      %2242 = vrot.lane.b32.xlu0 %v2163, 96
      %v2243 = vpop.permute.xlu0 %2242
      %2244 = vrot.lane.b32.xlu0 %v2164, 96
      %v2245 = vpop.permute.xlu0 %2244
      %2246 = vrot.lane.b32.xlu0 %v2165, 96
      %v2247 = vpop.permute.xlu0 %2246
      %2248 = vrot.lane.b32.xlu0 %v2166, 96
      %v2249 = vpop.permute.xlu0 %2248
      %2250 = vrot.lane.b32.xlu0 %v2167, 96
      %v2251 = vpop.permute.xlu0 %2250
      %2252 = vrot.lane.b32.xlu0 %v2168, 96
      %v2253 = vpop.permute.xlu0 %2252
      %2254 = vrot.lane.b32.xlu0 %v2169, 96
      %v2255 = vpop.permute.xlu0 %2254
      %2256 = vrot.lane.b32.xlu0 %v2170, 96
      %v2257 = vpop.permute.xlu0 %2256
      %2258 = vrot.lane.b32.xlu0 %v2171, 96
      %v2259 = vpop.permute.xlu0 %2258
      %2260 = vrot.lane.b32.xlu0 %v2172, 96
      %v2261 = vpop.permute.xlu0 %2260
      %2262 = vrot.lane.b32.xlu0 %v2173, 96
      %v2263 = vpop.permute.xlu0 %2262
      %2264 = vrot.lane.b32.xlu0 %v2174, 96
      %v2265 = vpop.permute.xlu0 %2264
      %2266 = vrot.lane.b32.xlu0 %v2175, 96
      %v2267 = vpop.permute.xlu0 %2266
      %2268 = vrot.lane.b32.xlu0 %v2176, 96
      %v2269 = vpop.permute.xlu0 %2268
      %2270 = vrot.lane.b32.xlu0 %v2177, 96
      %v2271 = vpop.permute.xlu0 %2270
      %2272 = vrot.lane.b32.xlu0 %v2178, 96
      %v2273 = vpop.permute.xlu0 %2272
      %2274 = vrot.lane.b32.xlu0 %v2179, 96
      %v2275 = vpop.permute.xlu0 %2274
      %v2308 = vadd.f32 %v997, %v2213
      %v2309 = vadd.f32 %v1000, %v2215
      %v2310 = vadd.f32 %v1005, %v2217
      %v2311 = vadd.f32 %v1008, %v2219
      %v2312 = vadd.f32 %v1013, %v2221
      %v2313 = vadd.f32 %v1016, %v2223
      %v2314 = vadd.f32 %v1021, %v2225
      %v2315 = vadd.f32 %v1024, %v2227
      %v2316 = vadd.f32 %v1029, %v2229
      %v2317 = vadd.f32 %v1032, %v2231
      %v2318 = vadd.f32 %v1037, %v2233
      %v2319 = vadd.f32 %v1040, %v2235
      %v2320 = vadd.f32 %v1045, %v2237
      %v2321 = vadd.f32 %v1048, %v2239
      %v2322 = vadd.f32 %v1053, %v2241
      %v2323 = vadd.f32 %v1056, %v2243
      %v2324 = vadd.f32 %v1061, %v2245
      %v2325 = vadd.f32 %v1064, %v2247
      %v2326 = vadd.f32 %v1069, %v2249
      %v2327 = vadd.f32 %v1072, %v2251
      %v2328 = vadd.f32 %v1077, %v2253
      %v2329 = vadd.f32 %v1080, %v2255
      %v2330 = vadd.f32 %v1085, %v2257
      %v2331 = vadd.f32 %v1088, %v2259
      %v2332 = vadd.f32 %v1093, %v2261
      %v2333 = vadd.f32 %v1096, %v2263
      %v2334 = vadd.f32 %v1101, %v2265
      %v2335 = vadd.f32 %v1104, %v2267
      %v2336 = vadd.f32 %v1109, %v2269
      %v2337 = vadd.f32 %v1112, %v2271
      %v2338 = vadd.f32 %v1117, %v2273
      %v2339 = vadd.f32 %v1120, %v2275
      %v2340 = vxor.u32 %v2308, 2147483648
      %v2341 = vxor.u32 %v2309, 2147483648
      %v2342 = vxor.u32 %v2310, 2147483648
      %v2343 = vxor.u32 %v2311, 2147483648
      %v2344 = vxor.u32 %v2312, 2147483648
      %v2345 = vxor.u32 %v2313, 2147483648
      %v2346 = vxor.u32 %v2314, 2147483648
      %v2347 = vxor.u32 %v2315, 2147483648
      %v2348 = vxor.u32 %v2316, 2147483648
      %v2349 = vxor.u32 %v2317, 2147483648
      %v2350 = vxor.u32 %v2318, 2147483648
      %v2351 = vxor.u32 %v2319, 2147483648
      %v2352 = vxor.u32 %v2320, 2147483648
      %v2353 = vxor.u32 %v2321, 2147483648
      %v2354 = vxor.u32 %v2322, 2147483648
      %v2355 = vxor.u32 %v2323, 2147483648
      %v2356 = vxor.u32 %v2324, 2147483648
      %v2357 = vxor.u32 %v2325, 2147483648
      %v2358 = vxor.u32 %v2326, 2147483648
      %v2359 = vxor.u32 %v2327, 2147483648
      %v2360 = vxor.u32 %v2328, 2147483648
      %v2361 = vxor.u32 %v2329, 2147483648
      %v2362 = vxor.u32 %v2330, 2147483648
      %v2363 = vxor.u32 %v2331, 2147483648
      %v2364 = vxor.u32 %v2332, 2147483648
      %v2365 = vxor.u32 %v2333, 2147483648
      %v2366 = vxor.u32 %v2334, 2147483648
      %v2367 = vxor.u32 %v2335, 2147483648
      %v2368 = vxor.u32 %v2336, 2147483648
      %v2369 = vxor.u32 %v2337, 2147483648
      %v2370 = vxor.u32 %v2338, 2147483648
      %v2371 = vxor.u32 %v2339, 2147483648
      %v2372 = vmul.f32 %v2340, 1.442695
      %v2373 = vpow.pop %v2372
      %v2374 = vmul.f32 %v2341, 1.442695
      %v2375 = vpow.pop %v2374
      %v2376 = vmul.f32 %v2342, 1.442695
      %v2377 = vpow.pop %v2376
      %v2378 = vmul.f32 %v2343, 1.442695
      %v2379 = vpow.pop %v2378
      %v2380 = vmul.f32 %v2344, 1.442695
      %v2381 = vpow.pop %v2380
      %v2382 = vmul.f32 %v2345, 1.442695
      %v2383 = vpow.pop %v2382
      %v2384 = vmul.f32 %v2346, 1.442695
      %v2385 = vpow.pop %v2384
      %v2386 = vmul.f32 %v2347, 1.442695
      %v2387 = vpow.pop %v2386
      %v2388 = vmul.f32 %v2348, 1.442695
      %v2389 = vpow.pop %v2388
      %v2390 = vmul.f32 %v2349, 1.442695
      %v2391 = vpow.pop %v2390
      %v2392 = vmul.f32 %v2350, 1.442695
      %v2393 = vpow.pop %v2392
      %v2394 = vmul.f32 %v2351, 1.442695
      %v2395 = vpow.pop %v2394
      %v2396 = vmul.f32 %v2352, 1.442695
      %v2397 = vpow.pop %v2396
      %v2398 = vmul.f32 %v2353, 1.442695
      %v2399 = vpow.pop %v2398
      %v2400 = vmul.f32 %v2354, 1.442695
      %v2401 = vpow.pop %v2400
      %v2402 = vmul.f32 %v2355, 1.442695
      %v2403 = vpow.pop %v2402
      %v2404 = vmul.f32 %v2356, 1.442695
      %v2405 = vpow.pop %v2404
      %v2406 = vmul.f32 %v2357, 1.442695
      %v2407 = vpow.pop %v2406
      %v2408 = vmul.f32 %v2358, 1.442695
      %v2409 = vpow.pop %v2408
      %v2410 = vmul.f32 %v2359, 1.442695
      %v2411 = vpow.pop %v2410
      %v2412 = vmul.f32 %v2360, 1.442695
      %v2413 = vpow.pop %v2412
      %v2414 = vmul.f32 %v2361, 1.442695
      %v2415 = vpow.pop %v2414
      %v2416 = vmul.f32 %v2362, 1.442695
      %v2417 = vpow.pop %v2416
      %v2418 = vmul.f32 %v2363, 1.442695
      %v2419 = vpow.pop %v2418
      %v2420 = vmul.f32 %v2364, 1.442695
      %v2421 = vpow.pop %v2420
      %v2422 = vmul.f32 %v2365, 1.442695
      %v2423 = vpow.pop %v2422
      %v2424 = vmul.f32 %v2366, 1.442695
      %v2425 = vpow.pop %v2424
      %v2426 = vmul.f32 %v2367, 1.442695
      %v2427 = vpow.pop %v2426
      %v2428 = vmul.f32 %v2368, 1.442695
      %v2429 = vpow.pop %v2428
      %v2430 = vmul.f32 %v2369, 1.442695
      %v2431 = vpow.pop %v2430
      %v2432 = vmul.f32 %v2370, 1.442695
      %v2433 = vpow.pop %v2432
      %v2434 = vmul.f32 %v2371, 1.442695
      %v2435 = vpow.pop %v2434
      %v2436 = vadd.f32 %v2373, 1.0
      %v2437 = vadd.f32 %v2375, 1.0
      %v2438 = vadd.f32 %v2377, 1.0
      %v2439 = vadd.f32 %v2379, 1.0
      %v2440 = vadd.f32 %v2381, 1.0
      %v2441 = vadd.f32 %v2383, 1.0
      %v2442 = vadd.f32 %v2385, 1.0
      %v2443 = vadd.f32 %v2387, 1.0
      %v2444 = vadd.f32 %v2389, 1.0
      %v2445 = vadd.f32 %v2391, 1.0
      %v2446 = vadd.f32 %v2393, 1.0
      %v2447 = vadd.f32 %v2395, 1.0
      %v2448 = vadd.f32 %v2397, 1.0
      %v2449 = vadd.f32 %v2399, 1.0
      %v2450 = vadd.f32 %v2401, 1.0
      %v2451 = vadd.f32 %v2403, 1.0
      %v2452 = vadd.f32 %v2405, 1.0
      %v2453 = vadd.f32 %v2407, 1.0
      %v2454 = vadd.f32 %v2409, 1.0
      %v2455 = vadd.f32 %v2411, 1.0
      %v2456 = vadd.f32 %v2413, 1.0
      %v2457 = vadd.f32 %v2415, 1.0
      %v2458 = vadd.f32 %v2417, 1.0
      %v2459 = vadd.f32 %v2419, 1.0
      %v2460 = vadd.f32 %v2421, 1.0
      %v2461 = vadd.f32 %v2423, 1.0
      %v2462 = vadd.f32 %v2425, 1.0
      %v2463 = vadd.f32 %v2427, 1.0
      %v2464 = vadd.f32 %v2429, 1.0
      %v2465 = vadd.f32 %v2431, 1.0
      %v2466 = vadd.f32 %v2433, 1.0
      %v2467 = vadd.f32 %v2435, 1.0
      %v2468 = vrcp.pop %v2436
      %v2469 = vmul.f32 1.0, %v2468
      %v2470 = vrcp.pop %v2437
      %v2471 = vmul.f32 1.0, %v2470
      %v2472 = vrcp.pop %v2438
      %v2473 = vmul.f32 1.0, %v2472
      %v2474 = vrcp.pop %v2439
      %v2475 = vmul.f32 1.0, %v2474
      %v2476 = vrcp.pop %v2440
      %v2477 = vmul.f32 1.0, %v2476
      %v2478 = vrcp.pop %v2441
      %v2479 = vmul.f32 1.0, %v2478
      %v2480 = vrcp.pop %v2442
      %v2481 = vmul.f32 1.0, %v2480
      %v2482 = vrcp.pop %v2443
      %v2483 = vmul.f32 1.0, %v2482
      %v2484 = vrcp.pop %v2444
      %v2485 = vmul.f32 1.0, %v2484
      %v2486 = vrcp.pop %v2445
      %v2487 = vmul.f32 1.0, %v2486
      %v2488 = vrcp.pop %v2446
      %v2489 = vmul.f32 1.0, %v2488
      %v2490 = vrcp.pop %v2447
      %v2491 = vmul.f32 1.0, %v2490
      %v2492 = vrcp.pop %v2448
      %v2493 = vmul.f32 1.0, %v2492
      %v2494 = vrcp.pop %v2449
      %v2495 = vmul.f32 1.0, %v2494
      %v2496 = vrcp.pop %v2450
      %v2497 = vmul.f32 1.0, %v2496
      %v2498 = vrcp.pop %v2451
      %v2499 = vmul.f32 1.0, %v2498
      %v2500 = vrcp.pop %v2452
      %v2501 = vmul.f32 1.0, %v2500
      %v2502 = vrcp.pop %v2453
      %v2503 = vmul.f32 1.0, %v2502
      %v2504 = vrcp.pop %v2454
      %v2505 = vmul.f32 1.0, %v2504
      %v2506 = vrcp.pop %v2455
      %v2507 = vmul.f32 1.0, %v2506
      %v2508 = vrcp.pop %v2456
      %v2509 = vmul.f32 1.0, %v2508
      %v2510 = vrcp.pop %v2457
      %v2511 = vmul.f32 1.0, %v2510
      %v2512 = vrcp.pop %v2458
      %v2513 = vmul.f32 1.0, %v2512
      %v2514 = vrcp.pop %v2459
      %v2515 = vmul.f32 1.0, %v2514
      %v2516 = vrcp.pop %v2460
      %v2517 = vmul.f32 1.0, %v2516
      %v2518 = vrcp.pop %v2461
      %v2519 = vmul.f32 1.0, %v2518
      %v2520 = vrcp.pop %v2462
      %v2521 = vmul.f32 1.0, %v2520
      %v2522 = vrcp.pop %v2463
      %v2523 = vmul.f32 1.0, %v2522
      %v2524 = vrcp.pop %v2464
      %v2525 = vmul.f32 1.0, %v2524
      %v2526 = vrcp.pop %v2465
      %v2527 = vmul.f32 1.0, %v2526
      %v2528 = vrcp.pop %v2466
      %v2529 = vmul.f32 1.0, %v2528
      %v2530 = vrcp.pop %v2467
      %v2531 = vmul.f32 1.0, %v2530
      %v2532 = vtanh.pop %v1956
      %v2533 = vtanh.pop %v1957
      %v2534 = vtanh.pop %v1958
      %v2535 = vtanh.pop %v1959
      %v2536 = vtanh.pop %v1960
      %v2537 = vtanh.pop %v1961
      %v2538 = vtanh.pop %v1962
      %v2539 = vtanh.pop %v1963
      %v2540 = vtanh.pop %v1964
      %v2541 = vtanh.pop %v1965
      %v2542 = vtanh.pop %v1966
      %v2543 = vtanh.pop %v1967
      %v2544 = vtanh.pop %v1968
      %v2545 = vtanh.pop %v1969
      %v2546 = vtanh.pop %v1970
      %v2547 = vtanh.pop %v1971
      %v2548 = vtanh.pop %v1972
      %v2549 = vtanh.pop %v1973
      %v2550 = vtanh.pop %v1974
      %v2551 = vtanh.pop %v1975
      %v2552 = vtanh.pop %v1976
      %v2553 = vtanh.pop %v1977
      %v2554 = vtanh.pop %v1978
      %v2555 = vtanh.pop %v1979
      %v2556 = vtanh.pop %v1980
      %v2557 = vtanh.pop %v1981
      %v2558 = vtanh.pop %v1982
      %v2559 = vtanh.pop %v1983
      %v2560 = vtanh.pop %v1984
      %v2561 = vtanh.pop %v1985
      %v2562 = vtanh.pop %v1986
      %v2563 = vtanh.pop %v1987
      %2596 = vrot.lane.b32.xlu0 %v2532, 64
      %v2597 = vpop.permute.xlu0 %2596
      %2598 = vrot.lane.b32.xlu0 %v2533, 64
      %v2599 = vpop.permute.xlu0 %2598
      %2600 = vrot.lane.b32.xlu0 %v2534, 64
      %v2601 = vpop.permute.xlu0 %2600
      %2602 = vrot.lane.b32.xlu0 %v2535, 64
      %v2603 = vpop.permute.xlu0 %2602
      %2604 = vrot.lane.b32.xlu0 %v2536, 64
      %v2605 = vpop.permute.xlu0 %2604
      %2606 = vrot.lane.b32.xlu0 %v2537, 64
      %v2607 = vpop.permute.xlu0 %2606
      %2608 = vrot.lane.b32.xlu0 %v2538, 64
      %v2609 = vpop.permute.xlu0 %2608
      %2610 = vrot.lane.b32.xlu0 %v2539, 64
      %v2611 = vpop.permute.xlu0 %2610
      %2612 = vrot.lane.b32.xlu0 %v2540, 64
      %v2613 = vpop.permute.xlu0 %2612
      %2614 = vrot.lane.b32.xlu0 %v2541, 64
      %v2615 = vpop.permute.xlu0 %2614
      %2616 = vrot.lane.b32.xlu0 %v2542, 64
      %v2617 = vpop.permute.xlu0 %2616
      %2618 = vrot.lane.b32.xlu0 %v2543, 64
      %v2619 = vpop.permute.xlu0 %2618
      %2620 = vrot.lane.b32.xlu0 %v2544, 64
      %v2621 = vpop.permute.xlu0 %2620
      %2622 = vrot.lane.b32.xlu0 %v2545, 64
      %v2623 = vpop.permute.xlu0 %2622
      %2624 = vrot.lane.b32.xlu0 %v2546, 64
      %v2625 = vpop.permute.xlu0 %2624
      %2626 = vrot.lane.b32.xlu0 %v2547, 64
      %v2627 = vpop.permute.xlu0 %2626
      %2628 = vrot.lane.b32.xlu0 %v2548, 64
      %v2629 = vpop.permute.xlu0 %2628
      %2630 = vrot.lane.b32.xlu0 %v2549, 64
      %v2631 = vpop.permute.xlu0 %2630
      %2632 = vrot.lane.b32.xlu0 %v2550, 64
      %v2633 = vpop.permute.xlu0 %2632
      %2634 = vrot.lane.b32.xlu0 %v2551, 64
      %v2635 = vpop.permute.xlu0 %2634
      %2636 = vrot.lane.b32.xlu0 %v2552, 64
      %v2637 = vpop.permute.xlu0 %2636
      %2638 = vrot.lane.b32.xlu0 %v2553, 64
      %v2639 = vpop.permute.xlu0 %2638
      %2640 = vrot.lane.b32.xlu0 %v2554, 64
      %v2641 = vpop.permute.xlu0 %2640
      %2642 = vrot.lane.b32.xlu0 %v2555, 64
      %v2643 = vpop.permute.xlu0 %2642
      %2644 = vrot.lane.b32.xlu0 %v2556, 64
      %v2645 = vpop.permute.xlu0 %2644
      %2646 = vrot.lane.b32.xlu0 %v2557, 64
      %v2647 = vpop.permute.xlu0 %2646
      %2648 = vrot.lane.b32.xlu0 %v2558, 64
      %v2649 = vpop.permute.xlu0 %2648
      %2650 = vrot.lane.b32.xlu0 %v2559, 64
      %v2651 = vpop.permute.xlu0 %2650
      %2652 = vrot.lane.b32.xlu0 %v2560, 64
      %v2653 = vpop.permute.xlu0 %2652
      %2654 = vrot.lane.b32.xlu0 %v2561, 64
      %v2655 = vpop.permute.xlu0 %2654
      %2656 = vrot.lane.b32.xlu0 %v2562, 64
      %v2657 = vpop.permute.xlu0 %2656
      %2658 = vrot.lane.b32.xlu0 %v2563, 64
      %v2659 = vpop.permute.xlu0 %2658
      %v2692 = vmul.f32 %v2469, %v2597
      %v2693 = vmul.f32 %v2471, %v2599
      %v2694 = vmul.f32 %v2473, %v2601
      %v2695 = vmul.f32 %v2475, %v2603
      %v2696 = vmul.f32 %v2477, %v2605
      %v2697 = vmul.f32 %v2479, %v2607
      %v2698 = vmul.f32 %v2481, %v2609
      %v2699 = vmul.f32 %v2483, %v2611
      %v2700 = vmul.f32 %v2485, %v2613
      %v2701 = vmul.f32 %v2487, %v2615
      %v2702 = vmul.f32 %v2489, %v2617
      %v2703 = vmul.f32 %v2491, %v2619
      %v2704 = vmul.f32 %v2493, %v2621
      %v2705 = vmul.f32 %v2495, %v2623
      %v2706 = vmul.f32 %v2497, %v2625
      %v2707 = vmul.f32 %v2499, %v2627
      %v2708 = vmul.f32 %v2501, %v2629
      %v2709 = vmul.f32 %v2503, %v2631
      %v2710 = vmul.f32 %v2505, %v2633
      %v2711 = vmul.f32 %v2507, %v2635
      %v2712 = vmul.f32 %v2509, %v2637
      %v2713 = vmul.f32 %v2511, %v2639
      %v2714 = vmul.f32 %v2513, %v2641
      %v2715 = vmul.f32 %v2515, %v2643
      %v2716 = vmul.f32 %v2517, %v2645
      %v2717 = vmul.f32 %v2519, %v2647
      %v2718 = vmul.f32 %v2521, %v2649
      %v2719 = vmul.f32 %v2523, %v2651
      %v2720 = vmul.f32 %v2525, %v2653
      %v2721 = vmul.f32 %v2527, %v2655
      %v2722 = vmul.f32 %v2529, %v2657
      %v2723 = vmul.f32 %v2531, %v2659
      %2756 = vrot.lane.b32.xlu0 %v2692, 32
      %v2757 = vpop.permute.xlu0 %2756
      %2758 = vrot.lane.b32.xlu0 %v2693, 32
      %v2759 = vpop.permute.xlu0 %2758
      %2760 = vrot.lane.b32.xlu0 %v2694, 32
      %v2761 = vpop.permute.xlu0 %2760
      %2762 = vrot.lane.b32.xlu0 %v2695, 32
      %v2763 = vpop.permute.xlu0 %2762
      %2764 = vrot.lane.b32.xlu0 %v2696, 32
      %v2765 = vpop.permute.xlu0 %2764
      %2766 = vrot.lane.b32.xlu0 %v2697, 32
      %v2767 = vpop.permute.xlu0 %2766
      %2768 = vrot.lane.b32.xlu0 %v2698, 32
      %v2769 = vpop.permute.xlu0 %2768
      %2770 = vrot.lane.b32.xlu0 %v2699, 32
      %v2771 = vpop.permute.xlu0 %2770
      %2772 = vrot.lane.b32.xlu0 %v2700, 32
      %v2773 = vpop.permute.xlu0 %2772
      %2774 = vrot.lane.b32.xlu0 %v2701, 32
      %v2775 = vpop.permute.xlu0 %2774
      %2776 = vrot.lane.b32.xlu0 %v2702, 32
      %v2777 = vpop.permute.xlu0 %2776
      %2778 = vrot.lane.b32.xlu0 %v2703, 32
      %v2779 = vpop.permute.xlu0 %2778
      %2780 = vrot.lane.b32.xlu0 %v2704, 32
      %v2781 = vpop.permute.xlu0 %2780
      %2782 = vrot.lane.b32.xlu0 %v2705, 32
      %v2783 = vpop.permute.xlu0 %2782
      %2784 = vrot.lane.b32.xlu0 %v2706, 32
      %v2785 = vpop.permute.xlu0 %2784
      %2786 = vrot.lane.b32.xlu0 %v2707, 32
      %v2787 = vpop.permute.xlu0 %2786
      %2788 = vrot.lane.b32.xlu0 %v2708, 32
      %v2789 = vpop.permute.xlu0 %2788
      %2790 = vrot.lane.b32.xlu0 %v2709, 32
      %v2791 = vpop.permute.xlu0 %2790
      %2792 = vrot.lane.b32.xlu0 %v2710, 32
      %v2793 = vpop.permute.xlu0 %2792
      %2794 = vrot.lane.b32.xlu0 %v2711, 32
      %v2795 = vpop.permute.xlu0 %2794
      %2796 = vrot.lane.b32.xlu0 %v2712, 32
      %v2797 = vpop.permute.xlu0 %2796
      %2798 = vrot.lane.b32.xlu0 %v2713, 32
      %v2799 = vpop.permute.xlu0 %2798
      %2800 = vrot.lane.b32.xlu0 %v2714, 32
      %v2801 = vpop.permute.xlu0 %2800
      %2802 = vrot.lane.b32.xlu0 %v2715, 32
      %v2803 = vpop.permute.xlu0 %2802
      %2804 = vrot.lane.b32.xlu0 %v2716, 32
      %v2805 = vpop.permute.xlu0 %2804
      %2806 = vrot.lane.b32.xlu0 %v2717, 32
      %v2807 = vpop.permute.xlu0 %2806
      %2808 = vrot.lane.b32.xlu0 %v2718, 32
      %v2809 = vpop.permute.xlu0 %2808
      %2810 = vrot.lane.b32.xlu0 %v2719, 32
      %v2811 = vpop.permute.xlu0 %2810
      %2812 = vrot.lane.b32.xlu0 %v2720, 32
      %v2813 = vpop.permute.xlu0 %2812
      %2814 = vrot.lane.b32.xlu0 %v2721, 32
      %v2815 = vpop.permute.xlu0 %2814
      %2816 = vrot.lane.b32.xlu0 %v2722, 32
      %v2817 = vpop.permute.xlu0 %2816
      %2818 = vrot.lane.b32.xlu0 %v2723, 32
      %v2819 = vpop.permute.xlu0 %2818
      %v2852 = vsel %vm1283, %v2757, %v1956
      %v2853 = vsel %vm1283, %v2759, %v1957
      %v2854 = vsel %vm1283, %v2761, %v1958
      %v2855 = vsel %vm1283, %v2763, %v1959
      %v2856 = vsel %vm1283, %v2765, %v1960
      %v2857 = vsel %vm1283, %v2767, %v1961
      %v2858 = vsel %vm1283, %v2769, %v1962
      %v2859 = vsel %vm1283, %v2771, %v1963
      %v2860 = vsel %vm1283, %v2773, %v1964
      %v2861 = vsel %vm1283, %v2775, %v1965
      %v2862 = vsel %vm1283, %v2777, %v1966
      %v2863 = vsel %vm1283, %v2779, %v1967
      %v2864 = vsel %vm1283, %v2781, %v1968
      %v2865 = vsel %vm1283, %v2783, %v1969
      %v2866 = vsel %vm1283, %v2785, %v1970
      %v2867 = vsel %vm1283, %v2787, %v1971
      %v2868 = vsel %vm1283, %v2789, %v1972
      %v2869 = vsel %vm1283, %v2791, %v1973
      %v2870 = vsel %vm1283, %v2793, %v1974
      %v2871 = vsel %vm1283, %v2795, %v1975
      %v2872 = vsel %vm1283, %v2797, %v1976
      %v2873 = vsel %vm1283, %v2799, %v1977
      %v2874 = vsel %vm1283, %v2801, %v1978
      %v2875 = vsel %vm1283, %v2803, %v1979
      %v2876 = vsel %vm1283, %v2805, %v1980
      %v2877 = vsel %vm1283, %v2807, %v1981
      %v2878 = vsel %vm1283, %v2809, %v1982
      %v2879 = vsel %vm1283, %v2811, %v1983
      %v2880 = vsel %vm1283, %v2813, %v1984
      %v2881 = vsel %vm1283, %v2815, %v1985
      %v2882 = vsel %vm1283, %v2817, %v1986
      %v2883 = vsel %vm1283, %v2819, %v1987
      %vm2884 = vcmask 523264
      %2885 = vst.msk [vmem:[%s271] sm:$0xff] %vm2884, %v2852
      %2886 = vst.msk [vmem:[%s271 + $0x8] sm:$0xff] %vm2884, %v2853
      %2887 = vst.msk [vmem:[%s271 + $0x10] sm:$0xff] %vm2884, %v2854
      %2888 = vst.msk [vmem:[%s271 + $0x18] sm:$0xff] %vm2884, %v2855
      %2889 = vst.msk [vmem:[%s271 + $0x20] sm:$0xff] %vm2884, %v2856
      %2890 = vst.msk [vmem:[%s271 + $0x28] sm:$0xff] %vm2884, %v2857
      %2891 = vst.msk [vmem:[%s271 + $0x30] sm:$0xff] %vm2884, %v2858
      %2892 = vst.msk [vmem:[%s271 + $0x38] sm:$0xff] %vm2884, %v2859
      %2893 = vst.msk [vmem:[%s271 + $0x40] sm:$0xff] %vm2884, %v2860
      %2894 = vst.msk [vmem:[%s271 + $0x48] sm:$0xff] %vm2884, %v2861
      %2895 = vst.msk [vmem:[%s271 + $0x50] sm:$0xff] %vm2884, %v2862
      %2896 = vst.msk [vmem:[%s271 + $0x58] sm:$0xff] %vm2884, %v2863
      %2897 = vst.msk [vmem:[%s271 + $0x60] sm:$0xff] %vm2884, %v2864
      %2898 = vst.msk [vmem:[%s271 + $0x68] sm:$0xff] %vm2884, %v2865
      %2899 = vst.msk [vmem:[%s271 + $0x70] sm:$0xff] %vm2884, %v2866
      %2900 = vst.msk [vmem:[%s271 + $0x78] sm:$0xff] %vm2884, %v2867
      %2901 = vst.msk [vmem:[%s271 + $0x80] sm:$0xff] %vm2884, %v2868
      %2902 = vst.msk [vmem:[%s271 + $0x88] sm:$0xff] %vm2884, %v2869
      %2903 = vst.msk [vmem:[%s271 + $0x90] sm:$0xff] %vm2884, %v2870
      %2904 = vst.msk [vmem:[%s271 + $0x98] sm:$0xff] %vm2884, %v2871
      %2905 = vst.msk [vmem:[%s271 + $0xa0] sm:$0xff] %vm2884, %v2872
      %2906 = vst.msk [vmem:[%s271 + $0xa8] sm:$0xff] %vm2884, %v2873
      %2907 = vst.msk [vmem:[%s271 + $0xb0] sm:$0xff] %vm2884, %v2874
      %2908 = vst.msk [vmem:[%s271 + $0xb8] sm:$0xff] %vm2884, %v2875
      %2909 = vst.msk [vmem:[%s271 + $0xc0] sm:$0xff] %vm2884, %v2876
      %2910 = vst.msk [vmem:[%s271 + $0xc8] sm:$0xff] %vm2884, %v2877
      %2911 = vst.msk [vmem:[%s271 + $0xd0] sm:$0xff] %vm2884, %v2878
      %2912 = vst.msk [vmem:[%s271 + $0xd8] sm:$0xff] %vm2884, %v2879
      %2913 = vst.msk [vmem:[%s271 + $0xe0] sm:$0xff] %vm2884, %v2880
      %2914 = vst.msk [vmem:[%s271 + $0xe8] sm:$0xff] %vm2884, %v2881
      %2915 = vst.msk [vmem:[%s271 + $0xf0] sm:$0xff] %vm2884, %v2882
      %2916 = vst.msk [vmem:[%s271 + $0xf8] sm:$0xff] %vm2884, %v2883
      %p2917 = scmp.lt.s32.totalorder %s17, 1
      %s2918 = scalar_select %p2917, %s17, 1
      %s2919 = smul.addr %s2918, 32
      %s2920 = smul.addr %s2919, 8
      %s2921 = scalar_lea.vmem %s6, %s2920
      // Predicated region
      $region45: #{conv_lstm_cell.1} parent=43 // pred_check
        %p2922 = pneg %p171
      $region46: #{conv_lstm_cell.1} parent=43 // pred_check_branch
        %2924 = sbr.rel (%p2922) target = $region48
      $region47: #{conv_lstm_cell.1} parent=43 // pred_region
        _
      $region48: #{conv_lstm_cell.1} parent=43 // pred_fallthru
        _
    $region44: #{conv_lstm_cell.1} parent=5 // pred_fallthru
      _
    %p2925 = scmp.le.s32.totalorder 2, %s12
    // Predicated region
    $region49: #{conv_lstm_cell.1} parent=5 // pred_check
      %p2926 = pneg %p2925
    $region50: #{conv_lstm_cell.1} parent=5 // pred_check_branch
      %2928 = sbr.rel (%p2926) target = $region52
    $region51: #{conv_lstm_cell.1} parent=5 // pred_region
      %s2929 = ssub.s32 %s12, 2
      // Predicated region
      $region53: #{conv_lstm_cell.1} parent=51 // pred_check
        %p2930 = pneg %p177
      $region54: #{conv_lstm_cell.1} parent=51 // pred_check_branch
        %2932 = sbr.rel (%p2930) target = $region56
      $region55: #{conv_lstm_cell.1} parent=51 // pred_region
        %p2933 = scmp.lt.s32.totalorder %s18, 1
        %s2934 = scalar_select %p2933, %s18, 1
        %s2935 = smul.addr %s2934, 32
        %s2936 = smul.addr %s2935, 8
        %s2937 = scalar_lea.vmem %s6, %s2936
      $region56: #{conv_lstm_cell.1} parent=51 // pred_fallthru
        _
    $region52: #{conv_lstm_cell.1} parent=5 // pred_fallthru
      _
  $region6: #{conv_lstm_cell.1} parent=0 // loop_footer
    %s16 = sadd.s32 1, %s12
  $region7: #{conv_lstm_cell.1} parent=0 // loop_footer_branch
    %11 = sbr.rel target = $region3
  $region8: #{conv_lstm_cell.1} parent=0 // loop_exit
    _

</llo_original>
